<compile_context>
chip_gen: v5e
topology: v5e:2x2
jax: 0.10.0
libtpu: 0.0.40
codegen_flags: <defaults>
</compile_context>

<pallas_src>
import jax
import jax.numpy as jnp
from jax.experimental import pallas as pl
from jax.experimental.pallas import tpu as pltpu


def _se_kernel(x_ref, e_ref, w1_ref, w2_ref, o_ref):
    # x_ref : (TB, C*L) stream-dtype lane-dense slab of the input
    # e_ref : (C, C*L)  stream-dtype expansion matrix, E[c, c*L + l] = 1
    # w1_ref: (H, C), w2_ref: (C, H)  f32 PyTorch nn.Linear (out, in) weights
    c, cl = e_ref.shape
    inv_l = 1.0 / (cl // c)

    x = x_ref[...]
    e = e_ref[...]

    # Squeeze: per-channel mean over L via the MXU (sum of each channel's L
    # lanes), accumulated in f32.
    y = jax.lax.dot_general(
        x, e, (((1,), (1,)), ((), ())),
        preferred_element_type=jnp.float32) * inv_l                      # (TB, C)

    # Excitation (f32): Linear(C->H) -> ReLU -> Linear(H->C) -> Sigmoid,
    # contracting directly against the (out, in) PyTorch weight layout.
    h = jax.lax.dot_general(
        y, w1_ref[...], (((1,), (1,)), ((), ())),
        preferred_element_type=jnp.float32)                              # (TB, H)
    h = jnp.maximum(h, 0.0)
    s = jax.lax.dot_general(
        h, w2_ref[...], (((1,), (1,)), ((), ())),
        preferred_element_type=jnp.float32)                              # (TB, C)
    s = jax.nn.sigmoid(s)

    # Scale: broadcast the (TB, C) gate back onto the lane-dense slab via the MXU.
    g = jnp.dot(s.astype(e.dtype), e, preferred_element_type=jnp.float32)  # (TB, C*L)
    o_ref[...] = (x.astype(jnp.float32) * g).astype(o_ref.dtype)


def _vmem_budgets():
    """(vmem_limit_bytes, streamed-tile budget bytes), derived from physical VMEM."""
    try:
        cap = int(pltpu.get_tpu_info().vmem_capacity_bytes)
    except Exception:
        cap = 64 << 20                                # conservative (v7x-sized) fallback
    vmem_limit = min((3 * cap) // 4, 96 << 20)        # 128 MiB -> 96 MiB; 64 MiB -> 48 MiB
    tile_budget = (2 * vmem_limit) // 3               # headroom for compiler temporaries
    return vmem_limit, tile_budget


def _pick_block_batch(b, c, l, stream_itemsize, budget_bytes, sublane):
    """Largest sublane-aligned batch tile whose streamed working set fits the
    budget, while keeping enough grid steps for the pipeline / v7x megacore."""
    cl = c * l
    # Resident operands: single-buffered expansion matrix (+ tiny weights).
    resident = c * cl * stream_itemsize + 4096
    # Per batch row: double-buffered in + out tiles plus f32 in-kernel temporaries.
    bytes_per_row = (4 * stream_itemsize + 8) * cl
    avail = max(budget_bytes - resident, 4 * sublane * bytes_per_row)
    tb = avail // bytes_per_row
    # Minimum pipeline depth once the stream is big enough to matter: a single
    # grid step serializes DMA/compute/write-back and starves one v7x TC.
    if b * cl * stream_itemsize > (4 << 20):
        tb = min(tb, pl.cdiv(b, 4))
    if tb >= b:
        return b
    tb = max(sublane, (tb // sublane) * sublane)
    return min(tb, b)


def se_layer(x, w1, w2, *, block_batch=None, stream_dtype=jnp.bfloat16):
    """SE forward.

    x: (B, C, L); w1: (H, C); w2: (C, H) (PyTorch nn.Linear (out, in) layout).
    stream_dtype: dtype of the HBM<->VMEM activation stream (and the returned
      array).  Default bfloat16 halves bytes moved on this bandwidth-bound
      kernel; pass None to stream in x.dtype (exact f32 path for f32 inputs).
    """
    b, c, l = x.shape
    hdim = w1.shape[0]
    cl = c * l

    if stream_dtype is None:
        stream_dtype = x.dtype
    stream_dtype = jnp.dtype(stream_dtype)
    s_item = stream_dtype.itemsize
    sublane = 16 if s_item < 4 else 8          # bf16 packs 16 rows per vreg tile

    # Lane-dense view of the activation stream (free row-major reshape).
    x2 = x.reshape(b, cl).astype(stream_dtype)

    # 0/1 expansion matrix (exact in bf16): E[c, c*L + l] = 1.  Used for both the
    # channel-sum (contract over the C*L axis) and the gate broadcast.
    # TODO(synk): for very large C*L (where E or a (TB, C*L) block no longer fits
    # v7x's 64 MiB VMEM) switch to a two-pass reduce-then-scale / C-tiled kernel.
    expand = jnp.repeat(jnp.eye(c, dtype=stream_dtype), l, axis=1)        # (C, C*L)

    # Excitation weights stay f32 inside the kernel.
    w1f = w1.astype(jnp.float32)
    w2f = w2.astype(jnp.float32)

    vmem_limit, tile_budget = _vmem_budgets()
    if block_batch is None:
        tb = _pick_block_batch(b, c, l, s_item, tile_budget, sublane)
    else:
        tb = min(int(block_batch), b)
        if tb != b:
            tb = max(sublane, (tb // sublane) * sublane)   # keep sublane-aligned
    grid = (pl.cdiv(b, tb),)

    def build_call(single_buffer_resident):
        def resident_spec(shape):
            if single_buffer_resident:
                # Grid-invariant operand: one VMEM copy is enough.
                return pl.BlockSpec(shape, lambda i: (0, 0),
                                    pipeline_mode=pl.Buffered(1))
            return pl.BlockSpec(shape, lambda i: (0, 0))

        return pl.pallas_call(
            _se_kernel,
            out_shape=jax.ShapeDtypeStruct((b, cl), stream_dtype),
            grid_spec=pltpu.PrefetchScalarGridSpec(
                num_scalar_prefetch=0,
                grid=grid,
                in_specs=[
                    pl.BlockSpec((tb, cl), lambda i: (i, 0)),   # streamed activation tile
                    resident_spec((c, cl)),                     # expansion matrix
                    resident_spec((hdim, c)),                   # W1 (out, in)
                    resident_spec((c, hdim)),                   # W2 (out, in)
                ],
                out_specs=pl.BlockSpec((tb, cl), lambda i: (i, 0)),
            ),
            compiler_params=pltpu.CompilerParams(
                dimension_semantics=("parallel",),   # pipelined + both v7x TCs
                vmem_limit_bytes=int(vmem_limit),
            ),
        )

    try:
        out2 = build_call(True)(x2, expand, w1f, w2f)
    except Exception:
        # pipeline_mode=pl.Buffered(1) not supported by this jax/libtpu build:
        # fall back to default double-buffered resident operands (correct, just
        # slightly more VMEM).
        out2 = build_call(False)(x2, expand, w1f, w2f)

    return out2.reshape(b, c, l)


def se_layer_ref(x, w1, w2):
    """Pure-JAX reference matching the PyTorch forward."""
    y = jnp.mean(x, axis=-1)                  # (B, C)
    h = jnp.maximum(y @ w1.T, 0.0)            # (B, H)
    s = jax.nn.sigmoid(h @ w2.T)              # (B, C)
    return x * s[:, :, None]


if __name__ == "__main__":
    B, C, L = 48, 64, 16
    reduction = 16
    H = C // reduction

    key = jax.random.PRNGKey(0)
    kx, k1, k2 = jax.random.split(key, 3)

    x = jax.random.normal(kx, (B, C, L), dtype=jnp.float32)
    # Deterministic synthetic weights (PyTorch nn.Linear layout: (out, in)).
    w1 = 0.1 * jax.random.normal(k1, (H, C), dtype=jnp.float32)
    w2 = 0.1 * jax.random.normal(k2, (C, H), dtype=jnp.float32)

    ref = se_layer_ref(x, w1, w2)

    # Exact f32 streaming path (tight match to the PyTorch forward).
    out_f32 = jax.block_until_ready(se_layer(x, w1, w2, stream_dtype=None))
    assert out_f32.shape == (B, C, L) and out_f32.dtype == jnp.float32
    assert jnp.allclose(out_f32, ref, atol=1e-4, rtol=1e-4), "f32 path mismatch"

    # Default bf16-streaming path (halves HBM bytes moved; SE gates tolerate bf16).
    out_bf16 = jax.block_until_ready(se_layer(x, w1, w2))
    assert out_bf16.dtype == jnp.bfloat16
    assert jnp.allclose(out_bf16.astype(jnp.float32), ref, atol=5e-2, rtol=5e-2), \
        "bf16 path mismatch"

    # Explicit batch tiling (grid=(3,)) to exercise the pipelined multi-step path.
    out_tiled = jax.block_until_ready(se_layer(x, w1, w2, block_batch=16))
    assert jnp.allclose(out_tiled.astype(jnp.float32), ref, atol=5e-2, rtol=5e-2), \
        "tiled bf16 path mismatch"

    print("KERNEL_OK")
</pallas_src>

<mosaic_0001>
module attributes {stable_mosaic.version = 11 : i64} {
  func.func @_se_kernel(%arg0: i32, %arg1: memref<48x1024xf32, #tpu.memory_space<vmem>>, %arg2: memref<64x1024xf32, #tpu.memory_space<vmem>>, %arg3: memref<4x64xf32, #tpu.memory_space<vmem>>, %arg4: memref<64x4xf32, #tpu.memory_space<vmem>>, %arg5: memref<48x1024xf32, #tpu.memory_space<vmem>>) attributes {dimension_semantics = [#tpu.dimension_semantics<parallel>], iteration_bounds = array<i64: 1>, scalar_prefetch = 0 : i64, scratch_operands = 0 : i64, tpu.core_type = #tpu.core_type<tc>, window_params = [{transform_indices = @transform_0, window_bounds = array<i64: 48, 1024>}, {pipeline_mode = #tpu.pipeline_mode<synchronous>, transform_indices = @transform_1, window_bounds = array<i64: 64, 1024>}, {pipeline_mode = #tpu.pipeline_mode<synchronous>, transform_indices = @transform_2, window_bounds = array<i64: 4, 64>}, {pipeline_mode = #tpu.pipeline_mode<synchronous>, transform_indices = @transform_3, window_bounds = array<i64: 64, 4>}, {transform_indices = @transform_4, window_bounds = array<i64: 48, 1024>}]} {
    %c0 = arith.constant 0 : index
    %c0_0 = arith.constant 0 : index
    %0 = vector.load %arg1[%c0, %c0_0] : memref<48x1024xf32, #tpu.memory_space<vmem>>, vector<48x1024xf32>
    %c0_1 = arith.constant 0 : index
    %c0_2 = arith.constant 0 : index
    %1 = vector.load %arg2[%c0_1, %c0_2] : memref<64x1024xf32, #tpu.memory_space<vmem>>, vector<64x1024xf32>
    %cst = arith.constant dense<0.000000e+00> : vector<48x64xf32>
    %2 = tpu.matmul %0, %1, %cst {dimension_numbers = #tpu.dot_dimension_numbers<[1], [1], [0], [0], [0, 0, 1, 0], [], []>} : vector<48x1024xf32>, vector<64x1024xf32>, vector<48x64xf32> -> vector<48x64xf32>
    %cst_3 = arith.constant 6.250000e-02 : f32
    %3 = vector.broadcast %cst_3 : f32 to vector<48x64xf32>
    %4 = arith.mulf %2, %3 : vector<48x64xf32>
    %c0_4 = arith.constant 0 : index
    %c0_5 = arith.constant 0 : index
    %5 = vector.load %arg3[%c0_4, %c0_5] : memref<4x64xf32, #tpu.memory_space<vmem>>, vector<4x64xf32>
    %cst_6 = arith.constant dense<0.000000e+00> : vector<48x4xf32>
    %6 = tpu.matmul %4, %5, %cst_6 {dimension_numbers = #tpu.dot_dimension_numbers<[1], [1], [0], [0], [0, 0, 1, 0], [], []>} : vector<48x64xf32>, vector<4x64xf32>, vector<48x4xf32> -> vector<48x4xf32>
    %cst_7 = arith.constant 0.000000e+00 : f32
    %7 = vector.broadcast %cst_7 : f32 to vector<48x4xf32>
    %8 = arith.maximumf %6, %7 : vector<48x4xf32>
    %c0_8 = arith.constant 0 : index
    %c0_9 = arith.constant 0 : index
    %9 = vector.load %arg4[%c0_8, %c0_9] : memref<64x4xf32, #tpu.memory_space<vmem>>, vector<64x4xf32>
    %cst_10 = arith.constant dense<0.000000e+00> : vector<48x64xf32>
    %10 = tpu.matmul %8, %9, %cst_10 {dimension_numbers = #tpu.dot_dimension_numbers<[1], [1], [0], [0], [0, 0, 1, 0], [], []>} : vector<48x4xf32>, vector<64x4xf32>, vector<48x64xf32> -> vector<48x64xf32>
    %11 = arith.negf %10 : vector<48x64xf32>
    %12 = math.exp %11 : vector<48x64xf32>
    %cst_11 = arith.constant 1.000000e+00 : f32
    %13 = vector.broadcast %cst_11 : f32 to vector<48x64xf32>
    %14 = arith.addf %13, %12 : vector<48x64xf32>
    %15 = arith.divf %13, %14 : vector<48x64xf32>
    %cst_12 = arith.constant dense<0.000000e+00> : vector<48x1024xf32>
    %16 = tpu.matmul %15, %1, %cst_12 {dimension_numbers = #tpu.dot_dimension_numbers<[1], [0], [0], [1], [0, 0, 1, 1], [], []>} : vector<48x64xf32>, vector<64x1024xf32>, vector<48x1024xf32> -> vector<48x1024xf32>
    %17 = arith.mulf %0, %16 : vector<48x1024xf32>
    %c0_13 = arith.constant 0 : index
    %c0_14 = arith.constant 0 : index
    %18 = vector.load %arg5[%c0_13, %c0_14] : memref<48x1024xf32, #tpu.memory_space<vmem>>, vector<48x1024xf32>
    tpu.vector_store %arg5[%c0_13, %c0_14], %17 {strides = array<i32>} : memref<48x1024xf32, #tpu.memory_space<vmem>>, vector<48x1024xf32>,
    return
  }
  func.func @transform_0(%arg0: i32) -> (i32, i32) {
    %c0_i32 = arith.constant 0 : i32
    %c0_i32_0 = arith.constant 0 : i32
    return %arg0, %c0_i32 : i32, i32
  }
  func.func @transform_1(%arg0: i32) -> (i32, i32) {
    %c0_i32 = arith.constant 0 : i32
    %c0_i32_0 = arith.constant 0 : i32
    %c0_i32_1 = arith.constant 0 : i32
    return %c0_i32, %c0_i32_0 : i32, i32
  }
  func.func @transform_2(%arg0: i32) -> (i32, i32) {
    %c0_i32 = arith.constant 0 : i32
    %c0_i32_0 = arith.constant 0 : i32
    %c0_i32_1 = arith.constant 0 : i32
    return %c0_i32, %c0_i32_0 : i32, i32
  }
  func.func @transform_3(%arg0: i32) -> (i32, i32) {
    %c0_i32 = arith.constant 0 : i32
    %c0_i32_0 = arith.constant 0 : i32
    %c0_i32_1 = arith.constant 0 : i32
    return %c0_i32, %c0_i32_0 : i32, i32
  }
  func.func @transform_4(%arg0: i32) -> (i32, i32) {
    %c0_i32 = arith.constant 0 : i32
    %c0_i32_0 = arith.constant 0 : i32
    return %arg0, %c0_i32 : i32, i32
  }
}

module attributes {stable_mosaic.version = 11 : i64} {
  func.func @_se_kernel(%arg0: i32, %arg1: memref<48x1024xf32, #tpu.memory_space<vmem>>, %arg2: memref<64x1024xf32, #tpu.memory_space<vmem>>, %arg3: memref<4x64xf32, #tpu.memory_space<vmem>>, %arg4: memref<64x4xf32, #tpu.memory_space<vmem>>, %arg5: memref<48x1024xf32, #tpu.memory_space<vmem>>) attributes {dimension_semantics = [#tpu.dimension_semantics<parallel>], iteration_bounds = array<i64: 1>, scalar_prefetch = 0 : i64, scratch_operands = 0 : i64, tpu.core_type = #tpu.core_type<tc>, window_params = [{transform_indices = @transform_0, window_bounds = array<i64: 48, 1024>}, {pipeline_mode = #tpu.pipeline_mode<synchronous>, transform_indices = @transform_1, window_bounds = array<i64: 64, 1024>}, {pipeline_mode = #tpu.pipeline_mode<synchronous>, transform_indices = @transform_2, window_bounds = array<i64: 4, 64>}, {pipeline_mode = #tpu.pipeline_mode<synchronous>, transform_indices = @transform_3, window_bounds = array<i64: 64, 4>}, {transform_indices = @transform_4, window_bounds = array<i64: 48, 1024>}]} {
    %c0 = arith.constant 0 : index
    %c0_0 = arith.constant 0 : index
    %0 = vector.load %arg1[%c0, %c0_0] : memref<48x1024xf32, #tpu.memory_space<vmem>>, vector<48x1024xf32>
    %c0_1 = arith.constant 0 : index
    %c0_2 = arith.constant 0 : index
    %1 = vector.load %arg2[%c0_1, %c0_2] : memref<64x1024xf32, #tpu.memory_space<vmem>>, vector<64x1024xf32>
    %cst = arith.constant dense<0.000000e+00> : vector<48x64xf32>
    %2 = tpu.matmul %0, %1, %cst {dimension_numbers = #tpu.dot_dimension_numbers<[1], [1], [0], [0], [0, 0, 1, 0], [], []>} : vector<48x1024xf32>, vector<64x1024xf32>, vector<48x64xf32> -> vector<48x64xf32>
    %cst_3 = arith.constant 6.250000e-02 : f32
    %3 = vector.broadcast %cst_3 : f32 to vector<48x64xf32>
    %4 = arith.mulf %2, %3 : vector<48x64xf32>
    %c0_4 = arith.constant 0 : index
    %c0_5 = arith.constant 0 : index
    %5 = vector.load %arg3[%c0_4, %c0_5] : memref<4x64xf32, #tpu.memory_space<vmem>>, vector<4x64xf32>
    %cst_6 = arith.constant dense<0.000000e+00> : vector<48x4xf32>
    %6 = tpu.matmul %4, %5, %cst_6 {dimension_numbers = #tpu.dot_dimension_numbers<[1], [1], [0], [0], [0, 0, 1, 0], [], []>} : vector<48x64xf32>, vector<4x64xf32>, vector<48x4xf32> -> vector<48x4xf32>
    %cst_7 = arith.constant 0.000000e+00 : f32
    %7 = vector.broadcast %cst_7 : f32 to vector<48x4xf32>
    %8 = arith.maximumf %6, %7 : vector<48x4xf32>
    %c0_8 = arith.constant 0 : index
    %c0_9 = arith.constant 0 : index
    %9 = vector.load %arg4[%c0_8, %c0_9] : memref<64x4xf32, #tpu.memory_space<vmem>>, vector<64x4xf32>
    %cst_10 = arith.constant dense<0.000000e+00> : vector<48x64xf32>
    %10 = tpu.matmul %8, %9, %cst_10 {dimension_numbers = #tpu.dot_dimension_numbers<[1], [1], [0], [0], [0, 0, 1, 0], [], []>} : vector<48x4xf32>, vector<64x4xf32>, vector<48x64xf32> -> vector<48x64xf32>
    %11 = arith.negf %10 : vector<48x64xf32>
    %12 = math.exp %11 : vector<48x64xf32>
    %cst_11 = arith.constant 1.000000e+00 : f32
    %13 = vector.broadcast %cst_11 : f32 to vector<48x64xf32>
    %14 = arith.addf %13, %12 : vector<48x64xf32>
    %15 = arith.divf %13, %14 : vector<48x64xf32>
    %cst_12 = arith.constant dense<0.000000e+00> : vector<48x1024xf32>
    %16 = tpu.matmul %15, %1, %cst_12 {dimension_numbers = #tpu.dot_dimension_numbers<[1], [0], [0], [1], [0, 0, 1, 1], [], []>} : vector<48x64xf32>, vector<64x1024xf32>, vector<48x1024xf32> -> vector<48x1024xf32>
    %17 = arith.mulf %0, %16 : vector<48x1024xf32>
    %c0_13 = arith.constant 0 : index
    %c0_14 = arith.constant 0 : index
    %18 = vector.load %arg5[%c0_13, %c0_14] : memref<48x1024xf32, #tpu.memory_space<vmem>>, vector<48x1024xf32>
    tpu.vector_store %arg5[%c0_13, %c0_14], %17 {strides = array<i32>} : memref<48x1024xf32, #tpu.memory_space<vmem>>, vector<48x1024xf32>,
    return
  }
  func.func @transform_0(%arg0: i32) -> (i32, i32) {
    %c0_i32 = arith.constant 0 : i32
    %c0_i32_0 = arith.constant 0 : i32
    return %arg0, %c0_i32 : i32, i32
  }
  func.func @transform_1(%arg0: i32) -> (i32, i32) {
    %c0_i32 = arith.constant 0 : i32
    %c0_i32_0 = arith.constant 0 : i32
    %c0_i32_1 = arith.constant 0 : i32
    return %c0_i32, %c0_i32_0 : i32, i32
  }
  func.func @transform_2(%arg0: i32) -> (i32, i32) {
    %c0_i32 = arith.constant 0 : i32
    %c0_i32_0 = arith.constant 0 : i32
    %c0_i32_1 = arith.constant 0 : i32
    return %c0_i32, %c0_i32_0 : i32, i32
  }
  func.func @transform_3(%arg0: i32) -> (i32, i32) {
    %c0_i32 = arith.constant 0 : i32
    %c0_i32_0 = arith.constant 0 : i32
    %c0_i32_1 = arith.constant 0 : i32
    return %c0_i32, %c0_i32_0 : i32, i32
  }
  func.func @transform_4(%arg0: i32) -> (i32, i32) {
    %c0_i32 = arith.constant 0 : i32
    %c0_i32_0 = arith.constant 0 : i32
    return %arg0, %c0_i32 : i32, i32
  }
}

</mosaic_0001>

<llo_original>
// kernel: tpu_custom_call.1
$region0: #{tpu_custom_call.1}
  #allocation0 [shape = 'u32[]', space=smem, size = 0x4, offset = 0x4, fixed_abs, tag = 'smem constant byte address 0x4 - core index']
  #allocation1 [shape = 'u32[72,128]{1,0:T(1,128)}', space=vmem, size = 0x9000, scoped, tag = 'internal scratch']
  %s0 = inlined_call_operand.hbm [shape: f32[48,1024], index: 0, kind: input, shape index: {}]
  %s1 = inlined_call_operand.hbm [shape: f32[64,1024], index: 1, kind: input, shape index: {}]
  %s2 = inlined_call_operand.vmem [shape: f32[4,64], index: 2, kind: input, shape index: {}]
  %s3 = inlined_call_operand.vmem [shape: f32[64,4], index: 3, kind: input, shape index: {}]
  %s4 = inlined_call_operand.hbm [shape: f32[48,1024], index: 4, kind: output, shape index: {}]
  %s5 = sld [smem:[#allocation0]]
  $region34: #{tpu_custom_call.1} parent=0
    _
  %s7 = ssub.s32 1, %s5
  %s8 = scalar_select 0, %s7, %s5
  $region1: #{tpu_custom_call.1} parent=0
    #allocation2 [shape = 'u8[196608]{0}', space=vmem, size = 0x30000, scoped, tag = 'input window, operand 0, single buffered']
    #allocation3 [shape = 's32[1]{0}', space=sflag, size = 0x4, scoped, tag = 'scoped memory for tpu_custom_call.1']
    #allocation4 [shape = 's32[1]{0}', space=sflag, size = 0x4, scoped, tag = 'scoped memory for tpu_custom_call.1']
    #allocation5 [shape = 'u8[262144]{0}', space=vmem, size = 0x40000, scoped, tag = 'input window, operand 1, single buffered']
    #allocation6 [shape = 's32[1]{0}', space=sflag, size = 0x4, scoped, tag = 'scoped memory for tpu_custom_call.1']
    #allocation7 [shape = 'u8[196608]{0}', space=vmem, size = 0x30000, scoped, tag = 'output window, operand 0, single buffered']
    %9 = vsyncpa [#allocation3], 0
    %10 = vsyncpa [#allocation6], 0
    %11 = vsyncpa [#allocation4], 0
    // Predicated region
    $region2: #{tpu_custom_call.1} parent=1 // pred_check
      _
    $region3: #{tpu_custom_call.1} parent=1 // pred_check_branch
      %13 = sbr.rel (0) target = $region5
    $region4: #{tpu_custom_call.1} parent=1 // pred_region
      %15 = vsyncadd [#allocation3], 0
      %s16 = sshll.u32 %s0, 4
      %s17 = int_to_ptr.hbm [resolvable:$true] %s16
      %s18 = sshll.u32 [#allocation2], 4
      %s19 = int_to_ptr.vmem [resolvable:$true] %s18
      %24 = dma.hbm_to_vmem [thread:$0]  %s17, 6144, %s19, [#allocation3], 1024, 1024, 64
    $region5: #{tpu_custom_call.1} parent=1 // pred_fallthru
      _
    // Predicated region
    $region6: #{tpu_custom_call.1} parent=1 // pred_check
      _
    $region7: #{tpu_custom_call.1} parent=1 // pred_check_branch
      %26 = sbr.rel (0) target = $region9
    $region8: #{tpu_custom_call.1} parent=1 // pred_region
      %28 = vsyncadd [#allocation6], 0
      %s29 = sshll.u32 %s1, 4
      %s30 = int_to_ptr.hbm [resolvable:$true] %s29
      %s31 = sshll.u32 [#allocation5], 4
      %s32 = int_to_ptr.vmem [resolvable:$true] %s31
      %37 = dma.hbm_to_vmem [thread:$0]  %s30, 8192, %s32, [#allocation6], 1024, 1024, 64
    $region9: #{tpu_custom_call.1} parent=1 // pred_fallthru
      _
    // Predicated region
    $region10: #{tpu_custom_call.1} parent=1 // pred_check
      _
    $region11: #{tpu_custom_call.1} parent=1 // pred_check_branch
      %39 = sbr.rel (0) target = $region13
    $region12: #{tpu_custom_call.1} parent=1 // pred_region
      _
    $region13: #{tpu_custom_call.1} parent=1 // pred_fallthru
      _
    // Predicated region
    $region14: #{tpu_custom_call.1} parent=1 // pred_check
      _
    $region15: #{tpu_custom_call.1} parent=1 // pred_check_branch
      %41 = sbr.rel (0) target = $region17
    $region16: #{tpu_custom_call.1} parent=1 // pred_region
      _
    $region17: #{tpu_custom_call.1} parent=1 // pred_fallthru
      _
    // Predicated region
    $region18: #{tpu_custom_call.1} parent=1 // pred_check
      _
    $region19: #{tpu_custom_call.1} parent=1 // pred_check_branch
      %43 = sbr.rel (0) target = $region21
    $region20: #{tpu_custom_call.1} parent=1 // pred_region
      %45 = dma.done [#allocation3], 6144
    $region21: #{tpu_custom_call.1} parent=1 // pred_fallthru
      _
    // Predicated region
    $region22: #{tpu_custom_call.1} parent=1 // pred_check
      _
    $region23: #{tpu_custom_call.1} parent=1 // pred_check_branch
      %47 = sbr.rel (0) target = $region25
    $region24: #{tpu_custom_call.1} parent=1 // pred_region
      %49 = dma.done [#allocation6], 8192
    $region25: #{tpu_custom_call.1} parent=1 // pred_fallthru
      _
    %v50 = vld [vmem:[#allocation2] sm:$0xff]
    %v51 = vld [vmem:[#allocation2 + $0x8] sm:$0xff]
    %v52 = vld [vmem:[#allocation2 + $0x10] sm:$0xff]
    %v53 = vld [vmem:[#allocation2 + $0x18] sm:$0xff]
    %v54 = vld [vmem:[#allocation2 + $0x20] sm:$0xff]
    %v55 = vld [vmem:[#allocation2 + $0x28] sm:$0xff]
    %v56 = vld [vmem:[#allocation2 + $0x30] sm:$0xff]
    %v57 = vld [vmem:[#allocation2 + $0x38] sm:$0xff]
    %v58 = vld [vmem:[#allocation2 + $0x40] sm:$0xff]
    %v59 = vld [vmem:[#allocation2 + $0x48] sm:$0xff]
    %v60 = vld [vmem:[#allocation2 + $0x50] sm:$0xff]
    %v61 = vld [vmem:[#allocation2 + $0x58] sm:$0xff]
    %v62 = vld [vmem:[#allocation2 + $0x60] sm:$0xff]
    %v63 = vld [vmem:[#allocation2 + $0x68] sm:$0xff]
    %v64 = vld [vmem:[#allocation2 + $0x70] sm:$0xff]
    %v65 = vld [vmem:[#allocation2 + $0x78] sm:$0xff]
    %v66 = vld [vmem:[#allocation2 + $0x80] sm:$0xff]
    %v67 = vld [vmem:[#allocation2 + $0x88] sm:$0xff]
    %v68 = vld [vmem:[#allocation2 + $0x90] sm:$0xff]
    %v69 = vld [vmem:[#allocation2 + $0x98] sm:$0xff]
    %v70 = vld [vmem:[#allocation2 + $0xa0] sm:$0xff]
    %v71 = vld [vmem:[#allocation2 + $0xa8] sm:$0xff]
    %v72 = vld [vmem:[#allocation2 + $0xb0] sm:$0xff]
    %v73 = vld [vmem:[#allocation2 + $0xb8] sm:$0xff]
    %v74 = vld [vmem:[#allocation2 + $0xc0] sm:$0xff]
    %v75 = vld [vmem:[#allocation2 + $0xc8] sm:$0xff]
    %v76 = vld [vmem:[#allocation2 + $0xd0] sm:$0xff]
    %v77 = vld [vmem:[#allocation2 + $0xd8] sm:$0xff]
    %v78 = vld [vmem:[#allocation2 + $0xe0] sm:$0xff]
    %v79 = vld [vmem:[#allocation2 + $0xe8] sm:$0xff]
    %v80 = vld [vmem:[#allocation2 + $0xf0] sm:$0xff]
    %v81 = vld [vmem:[#allocation2 + $0xf8] sm:$0xff]
    %v82 = vld [vmem:[#allocation2 + $0x100] sm:$0xff]
    %v83 = vld [vmem:[#allocation2 + $0x108] sm:$0xff]
    %v84 = vld [vmem:[#allocation2 + $0x110] sm:$0xff]
    %v85 = vld [vmem:[#allocation2 + $0x118] sm:$0xff]
    %v86 = vld [vmem:[#allocation2 + $0x120] sm:$0xff]
    %v87 = vld [vmem:[#allocation2 + $0x128] sm:$0xff]
    %v88 = vld [vmem:[#allocation2 + $0x130] sm:$0xff]
    %v89 = vld [vmem:[#allocation2 + $0x138] sm:$0xff]
    %v90 = vld [vmem:[#allocation2 + $0x140] sm:$0xff]
    %v91 = vld [vmem:[#allocation2 + $0x148] sm:$0xff]
    %v92 = vld [vmem:[#allocation2 + $0x150] sm:$0xff]
    %v93 = vld [vmem:[#allocation2 + $0x158] sm:$0xff]
    %v94 = vld [vmem:[#allocation2 + $0x160] sm:$0xff]
    %v95 = vld [vmem:[#allocation2 + $0x168] sm:$0xff]
    %v96 = vld [vmem:[#allocation2 + $0x170] sm:$0xff]
    %v97 = vld [vmem:[#allocation2 + $0x178] sm:$0xff]
    %v98 = vld [vmem:[#allocation5] sm:$0xff]
    %v99 = vld [vmem:[#allocation5 + $0x8] sm:$0xff]
    %v100 = vld [vmem:[#allocation5 + $0x10] sm:$0xff]
    %v101 = vld [vmem:[#allocation5 + $0x18] sm:$0xff]
    %v102 = vld [vmem:[#allocation5 + $0x20] sm:$0xff]
    %v103 = vld [vmem:[#allocation5 + $0x28] sm:$0xff]
    %v104 = vld [vmem:[#allocation5 + $0x30] sm:$0xff]
    %v105 = vld [vmem:[#allocation5 + $0x38] sm:$0xff]
    %v106 = vld [vmem:[#allocation5 + $0x40] sm:$0xff]
    %v107 = vld [vmem:[#allocation5 + $0x48] sm:$0xff]
    %v108 = vld [vmem:[#allocation5 + $0x50] sm:$0xff]
    %v109 = vld [vmem:[#allocation5 + $0x58] sm:$0xff]
    %v110 = vld [vmem:[#allocation5 + $0x60] sm:$0xff]
    %v111 = vld [vmem:[#allocation5 + $0x68] sm:$0xff]
    %v112 = vld [vmem:[#allocation5 + $0x70] sm:$0xff]
    %v113 = vld [vmem:[#allocation5 + $0x78] sm:$0xff]
    %v114 = vld [vmem:[#allocation5 + $0x80] sm:$0xff]
    %v115 = vld [vmem:[#allocation5 + $0x88] sm:$0xff]
    %v116 = vld [vmem:[#allocation5 + $0x90] sm:$0xff]
    %v117 = vld [vmem:[#allocation5 + $0x98] sm:$0xff]
    %v118 = vld [vmem:[#allocation5 + $0xa0] sm:$0xff]
    %v119 = vld [vmem:[#allocation5 + $0xa8] sm:$0xff]
    %v120 = vld [vmem:[#allocation5 + $0xb0] sm:$0xff]
    %v121 = vld [vmem:[#allocation5 + $0xb8] sm:$0xff]
    %v122 = vld [vmem:[#allocation5 + $0xc0] sm:$0xff]
    %v123 = vld [vmem:[#allocation5 + $0xc8] sm:$0xff]
    %v124 = vld [vmem:[#allocation5 + $0xd0] sm:$0xff]
    %v125 = vld [vmem:[#allocation5 + $0xd8] sm:$0xff]
    %v126 = vld [vmem:[#allocation5 + $0xe0] sm:$0xff]
    %v127 = vld [vmem:[#allocation5 + $0xe8] sm:$0xff]
    %v128 = vld [vmem:[#allocation5 + $0xf0] sm:$0xff]
    %v129 = vld [vmem:[#allocation5 + $0xf8] sm:$0xff]
    %v130 = vld [vmem:[#allocation5 + $0x100] sm:$0xff]
    %v131 = vld [vmem:[#allocation5 + $0x108] sm:$0xff]
    %v132 = vld [vmem:[#allocation5 + $0x110] sm:$0xff]
    %v133 = vld [vmem:[#allocation5 + $0x118] sm:$0xff]
    %v134 = vld [vmem:[#allocation5 + $0x120] sm:$0xff]
    %v135 = vld [vmem:[#allocation5 + $0x128] sm:$0xff]
    %v136 = vld [vmem:[#allocation5 + $0x130] sm:$0xff]
    %v137 = vld [vmem:[#allocation5 + $0x138] sm:$0xff]
    %v138 = vld [vmem:[#allocation5 + $0x140] sm:$0xff]
    %v139 = vld [vmem:[#allocation5 + $0x148] sm:$0xff]
    %v140 = vld [vmem:[#allocation5 + $0x150] sm:$0xff]
    %v141 = vld [vmem:[#allocation5 + $0x158] sm:$0xff]
    %v142 = vld [vmem:[#allocation5 + $0x160] sm:$0xff]
    %v143 = vld [vmem:[#allocation5 + $0x168] sm:$0xff]
    %v144 = vld [vmem:[#allocation5 + $0x170] sm:$0xff]
    %v145 = vld [vmem:[#allocation5 + $0x178] sm:$0xff]
    %v146 = vld [vmem:[#allocation5 + $0x180] sm:$0xff]
    %v147 = vld [vmem:[#allocation5 + $0x188] sm:$0xff]
    %v148 = vld [vmem:[#allocation5 + $0x190] sm:$0xff]
    %v149 = vld [vmem:[#allocation5 + $0x198] sm:$0xff]
    %v150 = vld [vmem:[#allocation5 + $0x1a0] sm:$0xff]
    %v151 = vld [vmem:[#allocation5 + $0x1a8] sm:$0xff]
    %v152 = vld [vmem:[#allocation5 + $0x1b0] sm:$0xff]
    %v153 = vld [vmem:[#allocation5 + $0x1b8] sm:$0xff]
    %v154 = vld [vmem:[#allocation5 + $0x1c0] sm:$0xff]
    %v155 = vld [vmem:[#allocation5 + $0x1c8] sm:$0xff]
    %v156 = vld [vmem:[#allocation5 + $0x1d0] sm:$0xff]
    %v157 = vld [vmem:[#allocation5 + $0x1d8] sm:$0xff]
    %v158 = vld [vmem:[#allocation5 + $0x1e0] sm:$0xff]
    %v159 = vld [vmem:[#allocation5 + $0x1e8] sm:$0xff]
    %v160 = vld [vmem:[#allocation5 + $0x1f0] sm:$0xff]
    %v161 = vld [vmem:[#allocation5 + $0x1f8] sm:$0xff]
    %162 = vmatpush.xpose.msra.mxu0 0.0
    %163 = vmatpush.xpose.msra.mxu0 0.0
    %164 = vmatpush.xpose.msra.mxu0 0.0
    %165 = vmatpush.xpose.msra.mxu0 0.0
    %166 = vmatpush.xpose.msra.mxu0 0.0
    %167 = vmatpush.xpose.msra.mxu0 0.0
    %168 = vmatpush.xpose.msra.mxu0 0.0
    %169 = vmatpush.xpose.msra.mxu0 0.0
    %170 = vmatpush.xpose.msra.mxu0 %v154
    %171 = vmatpush.xpose.msra.mxu0 %v146
    %172 = vmatpush.xpose.msra.mxu0 %v138
    %173 = vmatpush.xpose.msra.mxu0 %v130
    %174 = vmatpush.xpose.msra.mxu0 %v122
    %175 = vmatpush.xpose.msra.mxu0 %v114
    %176 = vmatpush.xpose.msra.mxu0 %v106
    %177 = vmatpush.xpose.msra.mxu0 %v98
    %178 = vmatmul.f32.gmra.mxu0 %v50
    %v179 = vpop.f32.mrf.mxu0
    %v180 = vadd.f32 0.0, %v179
    %181 = vmatmul.f32.gmra.mxu0 %v58
    %v182 = vpop.f32.mrf.mxu0
    %v183 = vadd.f32 0.0, %v182
    %184 = vmatmul.f32.gmra.mxu0 %v66
    %v185 = vpop.f32.mrf.mxu0
    %v186 = vadd.f32 0.0, %v185
    %187 = vmatmul.f32.gmra.mxu0 %v74
    %v188 = vpop.f32.mrf.mxu0
    %v189 = vadd.f32 0.0, %v188
    %190 = vmatmul.f32.gmra.mxu0 %v82
    %v191 = vpop.f32.mrf.mxu0
    %v192 = vadd.f32 0.0, %v191
    %193 = vmatmul.f32.gmra.mxu0 %v90
    %v194 = vpop.f32.mrf.mxu0
    %v195 = vadd.f32 0.0, %v194
    %196 = vdwg.mxu0
    %197 = vmatpush.xpose.msra.mxu0 0.0
    %198 = vmatpush.xpose.msra.mxu0 0.0
    %199 = vmatpush.xpose.msra.mxu0 0.0
    %200 = vmatpush.xpose.msra.mxu0 0.0
    %201 = vmatpush.xpose.msra.mxu0 0.0
    %202 = vmatpush.xpose.msra.mxu0 0.0
    %203 = vmatpush.xpose.msra.mxu0 0.0
    %204 = vmatpush.xpose.msra.mxu0 0.0
    %205 = vmatpush.xpose.msra.mxu0 %v155
    %206 = vmatpush.xpose.msra.mxu0 %v147
    %207 = vmatpush.xpose.msra.mxu0 %v139
    %208 = vmatpush.xpose.msra.mxu0 %v131
    %209 = vmatpush.xpose.msra.mxu0 %v123
    %210 = vmatpush.xpose.msra.mxu0 %v115
    %211 = vmatpush.xpose.msra.mxu0 %v107
    %212 = vmatpush.xpose.msra.mxu0 %v99
    %213 = vmatmul.f32.gmra.mxu0 %v51
    %v214 = vpop.f32.mrf.mxu0
    %v215 = vadd.f32 %v180, %v214
    %216 = vmatmul.f32.gmra.mxu0 %v59
    %v217 = vpop.f32.mrf.mxu0
    %v218 = vadd.f32 %v183, %v217
    %219 = vmatmul.f32.gmra.mxu0 %v67
    %v220 = vpop.f32.mrf.mxu0
    %v221 = vadd.f32 %v186, %v220
    %222 = vmatmul.f32.gmra.mxu0 %v75
    %v223 = vpop.f32.mrf.mxu0
    %v224 = vadd.f32 %v189, %v223
    %225 = vmatmul.f32.gmra.mxu0 %v83
    %v226 = vpop.f32.mrf.mxu0
    %v227 = vadd.f32 %v192, %v226
    %228 = vmatmul.f32.gmra.mxu0 %v91
    %v229 = vpop.f32.mrf.mxu0
    %v230 = vadd.f32 %v195, %v229
    %231 = vdwg.mxu0
    %232 = vmatpush.xpose.msra.mxu0 0.0
    %233 = vmatpush.xpose.msra.mxu0 0.0
    %234 = vmatpush.xpose.msra.mxu0 0.0
    %235 = vmatpush.xpose.msra.mxu0 0.0
    %236 = vmatpush.xpose.msra.mxu0 0.0
    %237 = vmatpush.xpose.msra.mxu0 0.0
    %238 = vmatpush.xpose.msra.mxu0 0.0
    %239 = vmatpush.xpose.msra.mxu0 0.0
    %240 = vmatpush.xpose.msra.mxu0 %v156
    %241 = vmatpush.xpose.msra.mxu0 %v148
    %242 = vmatpush.xpose.msra.mxu0 %v140
    %243 = vmatpush.xpose.msra.mxu0 %v132
    %244 = vmatpush.xpose.msra.mxu0 %v124
    %245 = vmatpush.xpose.msra.mxu0 %v116
    %246 = vmatpush.xpose.msra.mxu0 %v108
    %247 = vmatpush.xpose.msra.mxu0 %v100
    %248 = vmatmul.f32.gmra.mxu0 %v52
    %v249 = vpop.f32.mrf.mxu0
    %v250 = vadd.f32 %v215, %v249
    %251 = vmatmul.f32.gmra.mxu0 %v60
    %v252 = vpop.f32.mrf.mxu0
    %v253 = vadd.f32 %v218, %v252
    %254 = vmatmul.f32.gmra.mxu0 %v68
    %v255 = vpop.f32.mrf.mxu0
    %v256 = vadd.f32 %v221, %v255
    %257 = vmatmul.f32.gmra.mxu0 %v76
    %v258 = vpop.f32.mrf.mxu0
    %v259 = vadd.f32 %v224, %v258
    %260 = vmatmul.f32.gmra.mxu0 %v84
    %v261 = vpop.f32.mrf.mxu0
    %v262 = vadd.f32 %v227, %v261
    %263 = vmatmul.f32.gmra.mxu0 %v92
    %v264 = vpop.f32.mrf.mxu0
    %v265 = vadd.f32 %v230, %v264
    %266 = vdwg.mxu0
    %267 = vmatpush.xpose.msra.mxu0 0.0
    %268 = vmatpush.xpose.msra.mxu0 0.0
    %269 = vmatpush.xpose.msra.mxu0 0.0
    %270 = vmatpush.xpose.msra.mxu0 0.0
    %271 = vmatpush.xpose.msra.mxu0 0.0
    %272 = vmatpush.xpose.msra.mxu0 0.0
    %273 = vmatpush.xpose.msra.mxu0 0.0
    %274 = vmatpush.xpose.msra.mxu0 0.0
    %275 = vmatpush.xpose.msra.mxu0 %v157
    %276 = vmatpush.xpose.msra.mxu0 %v149
    %277 = vmatpush.xpose.msra.mxu0 %v141
    %278 = vmatpush.xpose.msra.mxu0 %v133
    %279 = vmatpush.xpose.msra.mxu0 %v125
    %280 = vmatpush.xpose.msra.mxu0 %v117
    %281 = vmatpush.xpose.msra.mxu0 %v109
    %282 = vmatpush.xpose.msra.mxu0 %v101
    %283 = vmatmul.f32.gmra.mxu0 %v53
    %v284 = vpop.f32.mrf.mxu0
    %v285 = vadd.f32 %v250, %v284
    %286 = vmatmul.f32.gmra.mxu0 %v61
    %v287 = vpop.f32.mrf.mxu0
    %v288 = vadd.f32 %v253, %v287
    %289 = vmatmul.f32.gmra.mxu0 %v69
    %v290 = vpop.f32.mrf.mxu0
    %v291 = vadd.f32 %v256, %v290
    %292 = vmatmul.f32.gmra.mxu0 %v77
    %v293 = vpop.f32.mrf.mxu0
    %v294 = vadd.f32 %v259, %v293
    %295 = vmatmul.f32.gmra.mxu0 %v85
    %v296 = vpop.f32.mrf.mxu0
    %v297 = vadd.f32 %v262, %v296
    %298 = vmatmul.f32.gmra.mxu0 %v93
    %v299 = vpop.f32.mrf.mxu0
    %v300 = vadd.f32 %v265, %v299
    %301 = vdwg.mxu0
    %302 = vmatpush.xpose.msra.mxu0 0.0
    %303 = vmatpush.xpose.msra.mxu0 0.0
    %304 = vmatpush.xpose.msra.mxu0 0.0
    %305 = vmatpush.xpose.msra.mxu0 0.0
    %306 = vmatpush.xpose.msra.mxu0 0.0
    %307 = vmatpush.xpose.msra.mxu0 0.0
    %308 = vmatpush.xpose.msra.mxu0 0.0
    %309 = vmatpush.xpose.msra.mxu0 0.0
    %310 = vmatpush.xpose.msra.mxu0 %v158
    %311 = vmatpush.xpose.msra.mxu0 %v150
    %312 = vmatpush.xpose.msra.mxu0 %v142
    %313 = vmatpush.xpose.msra.mxu0 %v134
    %314 = vmatpush.xpose.msra.mxu0 %v126
    %315 = vmatpush.xpose.msra.mxu0 %v118
    %316 = vmatpush.xpose.msra.mxu0 %v110
    %317 = vmatpush.xpose.msra.mxu0 %v102
    %318 = vmatmul.f32.gmra.mxu0 %v54
    %v319 = vpop.f32.mrf.mxu0
    %v320 = vadd.f32 %v285, %v319
    %321 = vmatmul.f32.gmra.mxu0 %v62
    %v322 = vpop.f32.mrf.mxu0
    %v323 = vadd.f32 %v288, %v322
    %324 = vmatmul.f32.gmra.mxu0 %v70
    %v325 = vpop.f32.mrf.mxu0
    %v326 = vadd.f32 %v291, %v325
    %327 = vmatmul.f32.gmra.mxu0 %v78
    %v328 = vpop.f32.mrf.mxu0
    %v329 = vadd.f32 %v294, %v328
    %330 = vmatmul.f32.gmra.mxu0 %v86
    %v331 = vpop.f32.mrf.mxu0
    %v332 = vadd.f32 %v297, %v331
    %333 = vmatmul.f32.gmra.mxu0 %v94
    %v334 = vpop.f32.mrf.mxu0
    %v335 = vadd.f32 %v300, %v334
    %336 = vdwg.mxu0
    %337 = vmatpush.xpose.msra.mxu0 0.0
    %338 = vmatpush.xpose.msra.mxu0 0.0
    %339 = vmatpush.xpose.msra.mxu0 0.0
    %340 = vmatpush.xpose.msra.mxu0 0.0
    %341 = vmatpush.xpose.msra.mxu0 0.0
    %342 = vmatpush.xpose.msra.mxu0 0.0
    %343 = vmatpush.xpose.msra.mxu0 0.0
    %344 = vmatpush.xpose.msra.mxu0 0.0
    %345 = vmatpush.xpose.msra.mxu0 %v159
    %346 = vmatpush.xpose.msra.mxu0 %v151
    %347 = vmatpush.xpose.msra.mxu0 %v143
    %348 = vmatpush.xpose.msra.mxu0 %v135
    %349 = vmatpush.xpose.msra.mxu0 %v127
    %350 = vmatpush.xpose.msra.mxu0 %v119
    %351 = vmatpush.xpose.msra.mxu0 %v111
    %352 = vmatpush.xpose.msra.mxu0 %v103
    %353 = vmatmul.f32.gmra.mxu0 %v55
    %v354 = vpop.f32.mrf.mxu0
    %v355 = vadd.f32 %v320, %v354
    %356 = vmatmul.f32.gmra.mxu0 %v63
    %v357 = vpop.f32.mrf.mxu0
    %v358 = vadd.f32 %v323, %v357
    %359 = vmatmul.f32.gmra.mxu0 %v71
    %v360 = vpop.f32.mrf.mxu0
    %v361 = vadd.f32 %v326, %v360
    %362 = vmatmul.f32.gmra.mxu0 %v79
    %v363 = vpop.f32.mrf.mxu0
    %v364 = vadd.f32 %v329, %v363
    %365 = vmatmul.f32.gmra.mxu0 %v87
    %v366 = vpop.f32.mrf.mxu0
    %v367 = vadd.f32 %v332, %v366
    %368 = vmatmul.f32.gmra.mxu0 %v95
    %v369 = vpop.f32.mrf.mxu0
    %v370 = vadd.f32 %v335, %v369
    %371 = vdwg.mxu0
    %372 = vmatpush.xpose.msra.mxu0 0.0
    %373 = vmatpush.xpose.msra.mxu0 0.0
    %374 = vmatpush.xpose.msra.mxu0 0.0
    %375 = vmatpush.xpose.msra.mxu0 0.0
    %376 = vmatpush.xpose.msra.mxu0 0.0
    %377 = vmatpush.xpose.msra.mxu0 0.0
    %378 = vmatpush.xpose.msra.mxu0 0.0
    %379 = vmatpush.xpose.msra.mxu0 0.0
    %380 = vmatpush.xpose.msra.mxu0 %v160
    %381 = vmatpush.xpose.msra.mxu0 %v152
    %382 = vmatpush.xpose.msra.mxu0 %v144
    %383 = vmatpush.xpose.msra.mxu0 %v136
    %384 = vmatpush.xpose.msra.mxu0 %v128
    %385 = vmatpush.xpose.msra.mxu0 %v120
    %386 = vmatpush.xpose.msra.mxu0 %v112
    %387 = vmatpush.xpose.msra.mxu0 %v104
    %388 = vmatmul.f32.gmra.mxu0 %v56
    %v389 = vpop.f32.mrf.mxu0
    %v390 = vadd.f32 %v355, %v389
    %391 = vmatmul.f32.gmra.mxu0 %v64
    %v392 = vpop.f32.mrf.mxu0
    %v393 = vadd.f32 %v358, %v392
    %394 = vmatmul.f32.gmra.mxu0 %v72
    %v395 = vpop.f32.mrf.mxu0
    %v396 = vadd.f32 %v361, %v395
    %397 = vmatmul.f32.gmra.mxu0 %v80
    %v398 = vpop.f32.mrf.mxu0
    %v399 = vadd.f32 %v364, %v398
    %400 = vmatmul.f32.gmra.mxu0 %v88
    %v401 = vpop.f32.mrf.mxu0
    %v402 = vadd.f32 %v367, %v401
    %403 = vmatmul.f32.gmra.mxu0 %v96
    %v404 = vpop.f32.mrf.mxu0
    %v405 = vadd.f32 %v370, %v404
    %406 = vdwg.mxu0
    %407 = vmatpush.xpose.msra.mxu0 0.0
    %408 = vmatpush.xpose.msra.mxu0 0.0
    %409 = vmatpush.xpose.msra.mxu0 0.0
    %410 = vmatpush.xpose.msra.mxu0 0.0
    %411 = vmatpush.xpose.msra.mxu0 0.0
    %412 = vmatpush.xpose.msra.mxu0 0.0
    %413 = vmatpush.xpose.msra.mxu0 0.0
    %414 = vmatpush.xpose.msra.mxu0 0.0
    %415 = vmatpush.xpose.msra.mxu0 %v161
    %416 = vmatpush.xpose.msra.mxu0 %v153
    %417 = vmatpush.xpose.msra.mxu0 %v145
    %418 = vmatpush.xpose.msra.mxu0 %v137
    %419 = vmatpush.xpose.msra.mxu0 %v129
    %420 = vmatpush.xpose.msra.mxu0 %v121
    %421 = vmatpush.xpose.msra.mxu0 %v113
    %422 = vmatpush.xpose.msra.mxu0 %v105
    %423 = vmatmul.f32.gmra.mxu0 %v57
    %v424 = vpop.f32.mrf.mxu0
    %v425 = vadd.f32 %v390, %v424
    %426 = vmatmul.f32.gmra.mxu0 %v65
    %v427 = vpop.f32.mrf.mxu0
    %v428 = vadd.f32 %v393, %v427
    %429 = vmatmul.f32.gmra.mxu0 %v73
    %v430 = vpop.f32.mrf.mxu0
    %v431 = vadd.f32 %v396, %v430
    %432 = vmatmul.f32.gmra.mxu0 %v81
    %v433 = vpop.f32.mrf.mxu0
    %v434 = vadd.f32 %v399, %v433
    %435 = vmatmul.f32.gmra.mxu0 %v89
    %v436 = vpop.f32.mrf.mxu0
    %v437 = vadd.f32 %v402, %v436
    %438 = vmatmul.f32.gmra.mxu0 %v97
    %v439 = vpop.f32.mrf.mxu0
    %v440 = vadd.f32 %v405, %v439
    %441 = vdwg.mxu0
    %v442 = vmul.f32 %v425, 0.0625
    %v443 = vmul.f32 %v428, 0.0625
    %v444 = vmul.f32 %v431, 0.0625
    %v445 = vmul.f32 %v434, 0.0625
    %v446 = vmul.f32 %v437, 0.0625
    %v447 = vmul.f32 %v440, 0.0625
    %v448 = vld [vmem:[%s2] sm:$0xf]
    %vm449 = vcmask 523264
    %v451 = vsel %vm449, %v442, 0
    %v454 = vsel %vm449, %v443, 0
    %v457 = vsel %vm449, %v444, 0
    %v460 = vsel %vm449, %v445, 0
    %v463 = vsel %vm449, %v446, 0
    %v466 = vsel %vm449, %v447, 0
    %v469 = vsel %vm449, %v448, 0
    %471 = vmatpush.xpose.msra.mxu0 0.0
    %472 = vmatpush.xpose.msra.mxu0 0.0
    %473 = vmatpush.xpose.msra.mxu0 0.0
    %474 = vmatpush.xpose.msra.mxu0 0.0
    %475 = vmatpush.xpose.msra.mxu0 0.0
    %476 = vmatpush.xpose.msra.mxu0 0.0
    %477 = vmatpush.xpose.msra.mxu0 0.0
    %478 = vmatpush.xpose.msra.mxu0 0.0
    %479 = vmatpush.xpose.msra.mxu0 0.0
    %480 = vmatpush.xpose.msra.mxu0 0.0
    %481 = vmatpush.xpose.msra.mxu0 0.0
    %482 = vmatpush.xpose.msra.mxu0 0.0
    %483 = vmatpush.xpose.msra.mxu0 0.0
    %484 = vmatpush.xpose.msra.mxu0 0.0
    %485 = vmatpush.xpose.msra.mxu0 0.0
    %486 = vmatpush.xpose.msra.mxu0 %v469
    %487 = vmatmul.f32.gmra.mxu0 %v451
    %v488 = vpop.f32.mrf.mxu0
    %v489 = vadd.f32 0.0, %v488
    %490 = vmatmul.f32.gmra.mxu0 %v454
    %v491 = vpop.f32.mrf.mxu0
    %v492 = vadd.f32 0.0, %v491
    %493 = vmatmul.f32.gmra.mxu0 %v457
    %v494 = vpop.f32.mrf.mxu0
    %v495 = vadd.f32 0.0, %v494
    %496 = vmatmul.f32.gmra.mxu0 %v460
    %v497 = vpop.f32.mrf.mxu0
    %v498 = vadd.f32 0.0, %v497
    %499 = vmatmul.f32.gmra.mxu0 %v463
    %v500 = vpop.f32.mrf.mxu0
    %v501 = vadd.f32 0.0, %v500
    %502 = vmatmul.f32.gmra.mxu0 %v466
    %v503 = vpop.f32.mrf.mxu0
    %v504 = vadd.f32 0.0, %v503
    %505 = vdwg.mxu0
    %v506 = vmax.f32 %v489, 0.0
    %v507 = vmax.f32 %v492, 0.0
    %v508 = vmax.f32 %v495, 0.0
    %v509 = vmax.f32 %v498, 0.0
    %v510 = vmax.f32 %v501, 0.0
    %v511 = vmax.f32 %v504, 0.0
    %v512 = vld [vmem:[%s3] sm:$0xff]
    %v513 = vld [vmem:[%s3 + $0x8] sm:$0xff]
    %v514 = vld [vmem:[%s3 + $0x10] sm:$0xff]
    %v515 = vld [vmem:[%s3 + $0x18] sm:$0xff]
    %v516 = vld [vmem:[%s3 + $0x20] sm:$0xff]
    %v517 = vld [vmem:[%s3 + $0x28] sm:$0xff]
    %v518 = vld [vmem:[%s3 + $0x30] sm:$0xff]
    %v519 = vld [vmem:[%s3 + $0x38] sm:$0xff]
    %vm520 = vcmask 31744
    %v522 = vsel %vm520, %v506, 0
    %v525 = vsel %vm520, %v507, 0
    %v528 = vsel %vm520, %v508, 0
    %v531 = vsel %vm520, %v509, 0
    %v534 = vsel %vm520, %v510, 0
    %v537 = vsel %vm520, %v511, 0
    %v540 = vsel %vm520, %v512, 0
    %v543 = vsel %vm520, %v513, 0
    %v546 = vsel %vm520, %v514, 0
    %v549 = vsel %vm520, %v515, 0
    %v552 = vsel %vm520, %v516, 0
    %v555 = vsel %vm520, %v517, 0
    %v558 = vsel %vm520, %v518, 0
    %v561 = vsel %vm520, %v519, 0
    %563 = vmatpush.xpose.msra.mxu0 0.0
    %564 = vmatpush.xpose.msra.mxu0 0.0
    %565 = vmatpush.xpose.msra.mxu0 0.0
    %566 = vmatpush.xpose.msra.mxu0 0.0
    %567 = vmatpush.xpose.msra.mxu0 0.0
    %568 = vmatpush.xpose.msra.mxu0 0.0
    %569 = vmatpush.xpose.msra.mxu0 0.0
    %570 = vmatpush.xpose.msra.mxu0 0.0
    %571 = vmatpush.xpose.msra.mxu0 %v561
    %572 = vmatpush.xpose.msra.mxu0 %v558
    %573 = vmatpush.xpose.msra.mxu0 %v555
    %574 = vmatpush.xpose.msra.mxu0 %v552
    %575 = vmatpush.xpose.msra.mxu0 %v549
    %576 = vmatpush.xpose.msra.mxu0 %v546
    %577 = vmatpush.xpose.msra.mxu0 %v543
    %578 = vmatpush.xpose.msra.mxu0 %v540
    %579 = vmatmul.f32.gmra.mxu0 %v522
    %v580 = vpop.f32.mrf.mxu0
    %v581 = vadd.f32 0.0, %v580
    %582 = vmatmul.f32.gmra.mxu0 %v525
    %v583 = vpop.f32.mrf.mxu0
    %v584 = vadd.f32 0.0, %v583
    %585 = vmatmul.f32.gmra.mxu0 %v528
    %v586 = vpop.f32.mrf.mxu0
    %v587 = vadd.f32 0.0, %v586
    %588 = vmatmul.f32.gmra.mxu0 %v531
    %v589 = vpop.f32.mrf.mxu0
    %v590 = vadd.f32 0.0, %v589
    %591 = vmatmul.f32.gmra.mxu0 %v534
    %v592 = vpop.f32.mrf.mxu0
    %v593 = vadd.f32 0.0, %v592
    %594 = vmatmul.f32.gmra.mxu0 %v537
    %v595 = vpop.f32.mrf.mxu0
    %v596 = vadd.f32 0.0, %v595
    %597 = vdwg.mxu0
    %v598 = vxor.u32 %v581, 2147483648
    %v599 = vxor.u32 %v584, 2147483648
    %v600 = vxor.u32 %v587, 2147483648
    %v601 = vxor.u32 %v590, 2147483648
    %v602 = vxor.u32 %v593, 2147483648
    %v603 = vxor.u32 %v596, 2147483648
    %v604 = vmul.f32 %v598, 1.442695
    %v605 = vpow.pop %v604
    %v606 = vmul.f32 %v599, 1.442695
    %v607 = vpow.pop %v606
    %v608 = vmul.f32 %v600, 1.442695
    %v609 = vpow.pop %v608
    %v610 = vmul.f32 %v601, 1.442695
    %v611 = vpow.pop %v610
    %v612 = vmul.f32 %v602, 1.442695
    %v613 = vpow.pop %v612
    %v614 = vmul.f32 %v603, 1.442695
    %v615 = vpow.pop %v614
    %v616 = vadd.f32 %v605, 1.0
    %v617 = vadd.f32 %v607, 1.0
    %v618 = vadd.f32 %v609, 1.0
    %v619 = vadd.f32 %v611, 1.0
    %v620 = vadd.f32 %v613, 1.0
    %v621 = vadd.f32 %v615, 1.0
    %v622 = vrcp.pop %v616
    %v623 = vmul.f32 %v616, %v622
    %v624 = vsub.f32 1.0, %v623
    %v625 = vmul.f32 %v622, %v624
    %v626 = vadd.f32 %v622, %v625
    %vm627 = vweird.f32 %v616
    %vm628 = vweird.f32 %v622
    %vm629 = vmor %vm627, %vm628
    %v630 = vsel %vm629, %v622, %v626
    %v631 = vand.u32 2147483647, %v616
    %vm632 = vcmp.eq.f32.partialorder %v631, 8.507059e+37
    %v633 = vand.u32 %v616, 2147483648
    %v634 = vor.u32 1.1754944e-38, %v633
    %v635 = vsel %vm632, %v634, %v630
    %v636 = vmul.f32 1.0, %v635
    %v637 = vrcp.pop %v617
    %v638 = vmul.f32 %v617, %v637
    %v639 = vsub.f32 1.0, %v638
    %v640 = vmul.f32 %v637, %v639
    %v641 = vadd.f32 %v637, %v640
    %vm642 = vweird.f32 %v617
    %vm643 = vweird.f32 %v637
    %vm644 = vmor %vm642, %vm643
    %v645 = vsel %vm644, %v637, %v641
    %v646 = vand.u32 2147483647, %v617
    %vm647 = vcmp.eq.f32.partialorder %v646, 8.507059e+37
    %v648 = vand.u32 %v617, 2147483648
    %v649 = vor.u32 1.1754944e-38, %v648
    %v650 = vsel %vm647, %v649, %v645
    %v651 = vmul.f32 1.0, %v650
    %v652 = vrcp.pop %v618
    %v653 = vmul.f32 %v618, %v652
    %v654 = vsub.f32 1.0, %v653
    %v655 = vmul.f32 %v652, %v654
    %v656 = vadd.f32 %v652, %v655
    %vm657 = vweird.f32 %v618
    %vm658 = vweird.f32 %v652
    %vm659 = vmor %vm657, %vm658
    %v660 = vsel %vm659, %v652, %v656
    %v661 = vand.u32 2147483647, %v618
    %vm662 = vcmp.eq.f32.partialorder %v661, 8.507059e+37
    %v663 = vand.u32 %v618, 2147483648
    %v664 = vor.u32 1.1754944e-38, %v663
    %v665 = vsel %vm662, %v664, %v660
    %v666 = vmul.f32 1.0, %v665
    %v667 = vrcp.pop %v619
    %v668 = vmul.f32 %v619, %v667
    %v669 = vsub.f32 1.0, %v668
    %v670 = vmul.f32 %v667, %v669
    %v671 = vadd.f32 %v667, %v670
    %vm672 = vweird.f32 %v619
    %vm673 = vweird.f32 %v667
    %vm674 = vmor %vm672, %vm673
    %v675 = vsel %vm674, %v667, %v671
    %v676 = vand.u32 2147483647, %v619
    %vm677 = vcmp.eq.f32.partialorder %v676, 8.507059e+37
    %v678 = vand.u32 %v619, 2147483648
    %v679 = vor.u32 1.1754944e-38, %v678
    %v680 = vsel %vm677, %v679, %v675
    %v681 = vmul.f32 1.0, %v680
    %v682 = vrcp.pop %v620
    %v683 = vmul.f32 %v620, %v682
    %v684 = vsub.f32 1.0, %v683
    %v685 = vmul.f32 %v682, %v684
    %v686 = vadd.f32 %v682, %v685
    %vm687 = vweird.f32 %v620
    %vm688 = vweird.f32 %v682
    %vm689 = vmor %vm687, %vm688
    %v690 = vsel %vm689, %v682, %v686
    %v691 = vand.u32 2147483647, %v620
    %vm692 = vcmp.eq.f32.partialorder %v691, 8.507059e+37
    %v693 = vand.u32 %v620, 2147483648
    %v694 = vor.u32 1.1754944e-38, %v693
    %v695 = vsel %vm692, %v694, %v690
    %v696 = vmul.f32 1.0, %v695
    %v697 = vrcp.pop %v621
    %v698 = vmul.f32 %v621, %v697
    %v699 = vsub.f32 1.0, %v698
    %v700 = vmul.f32 %v697, %v699
    %v701 = vadd.f32 %v697, %v700
    %vm702 = vweird.f32 %v621
    %vm703 = vweird.f32 %v697
    %vm704 = vmor %vm702, %vm703
    %v705 = vsel %vm704, %v697, %v701
    %v706 = vand.u32 2147483647, %v621
    %vm707 = vcmp.eq.f32.partialorder %v706, 8.507059e+37
    %v708 = vand.u32 %v621, 2147483648
    %v709 = vor.u32 1.1754944e-38, %v708
    %v710 = vsel %vm707, %v709, %v705
    %v711 = vmul.f32 1.0, %v710
    %v713 = vsel %vm449, %v636, 0
    %v716 = vsel %vm449, %v651, 0
    %v719 = vsel %vm449, %v666, 0
    %v722 = vsel %vm449, %v681, 0
    %v725 = vsel %vm449, %v696, 0
    %v728 = vsel %vm449, %v711, 0
    %730 = vmatpush.msra.mxu0 0.0
    %731 = vmatpush.msra.mxu0 0.0
    %732 = vmatpush.msra.mxu0 0.0
    %733 = vmatpush.msra.mxu0 0.0
    %734 = vmatpush.msra.mxu0 0.0
    %735 = vmatpush.msra.mxu0 0.0
    %736 = vmatpush.msra.mxu0 0.0
    %737 = vmatpush.msra.mxu0 0.0
    %738 = vmatpush.msra.mxu0 %v154
    %739 = vmatpush.msra.mxu0 %v146
    %740 = vmatpush.msra.mxu0 %v138
    %741 = vmatpush.msra.mxu0 %v130
    %742 = vmatpush.msra.mxu0 %v122
    %743 = vmatpush.msra.mxu0 %v114
    %744 = vmatpush.msra.mxu0 %v106
    %745 = vmatpush.msra.mxu0 %v98
    %746 = vmatmul.f32.gmra.mxu0 %v713
    %v747 = vpop.f32.mrf.mxu0
    %v748 = vadd.f32 0.0, %v747
    %749 = vmatmul.f32.gmra.mxu0 %v716
    %v750 = vpop.f32.mrf.mxu0
    %v751 = vadd.f32 0.0, %v750
    %752 = vmatmul.f32.gmra.mxu0 %v719
    %v753 = vpop.f32.mrf.mxu0
    %v754 = vadd.f32 0.0, %v753
    %755 = vmatmul.f32.gmra.mxu0 %v722
    %v756 = vpop.f32.mrf.mxu0
    %v757 = vadd.f32 0.0, %v756
    %758 = vmatmul.f32.gmra.mxu0 %v725
    %v759 = vpop.f32.mrf.mxu0
    %v760 = vadd.f32 0.0, %v759
    %761 = vmatmul.f32.gmra.mxu0 %v728
    %v762 = vpop.f32.mrf.mxu0
    %v763 = vadd.f32 0.0, %v762
    %764 = vdwg.mxu0
    %765 = vmatpush.msra.mxu0 0.0
    %766 = vmatpush.msra.mxu0 0.0
    %767 = vmatpush.msra.mxu0 0.0
    %768 = vmatpush.msra.mxu0 0.0
    %769 = vmatpush.msra.mxu0 0.0
    %770 = vmatpush.msra.mxu0 0.0
    %771 = vmatpush.msra.mxu0 0.0
    %772 = vmatpush.msra.mxu0 0.0
    %773 = vmatpush.msra.mxu0 %v155
    %774 = vmatpush.msra.mxu0 %v147
    %775 = vmatpush.msra.mxu0 %v139
    %776 = vmatpush.msra.mxu0 %v131
    %777 = vmatpush.msra.mxu0 %v123
    %778 = vmatpush.msra.mxu0 %v115
    %779 = vmatpush.msra.mxu0 %v107
    %780 = vmatpush.msra.mxu0 %v99
    %781 = vmatmul.f32.gmra.mxu0 %v713
    %v782 = vpop.f32.mrf.mxu0
    %v783 = vadd.f32 0.0, %v782
    %784 = vmatmul.f32.gmra.mxu0 %v716
    %v785 = vpop.f32.mrf.mxu0
    %v786 = vadd.f32 0.0, %v785
    %787 = vmatmul.f32.gmra.mxu0 %v719
    %v788 = vpop.f32.mrf.mxu0
    %v789 = vadd.f32 0.0, %v788
    %790 = vmatmul.f32.gmra.mxu0 %v722
    %v791 = vpop.f32.mrf.mxu0
    %v792 = vadd.f32 0.0, %v791
    %793 = vmatmul.f32.gmra.mxu0 %v725
    %v794 = vpop.f32.mrf.mxu0
    %v795 = vadd.f32 0.0, %v794
    %796 = vmatmul.f32.gmra.mxu0 %v728
    %v797 = vpop.f32.mrf.mxu0
    %v798 = vadd.f32 0.0, %v797
    %799 = vdwg.mxu0
    %800 = vmatpush.msra.mxu0 0.0
    %801 = vmatpush.msra.mxu0 0.0
    %802 = vmatpush.msra.mxu0 0.0
    %803 = vmatpush.msra.mxu0 0.0
    %804 = vmatpush.msra.mxu0 0.0
    %805 = vmatpush.msra.mxu0 0.0
    %806 = vmatpush.msra.mxu0 0.0
    %807 = vmatpush.msra.mxu0 0.0
    %808 = vmatpush.msra.mxu0 %v156
    %809 = vmatpush.msra.mxu0 %v148
    %810 = vmatpush.msra.mxu0 %v140
    %811 = vmatpush.msra.mxu0 %v132
    %812 = vmatpush.msra.mxu0 %v124
    %813 = vmatpush.msra.mxu0 %v116
    %814 = vmatpush.msra.mxu0 %v108
    %815 = vmatpush.msra.mxu0 %v100
    %816 = vmatmul.f32.gmra.mxu0 %v713
    %v817 = vpop.f32.mrf.mxu0
    %v818 = vadd.f32 0.0, %v817
    %819 = vmatmul.f32.gmra.mxu0 %v716
    %v820 = vpop.f32.mrf.mxu0
    %v821 = vadd.f32 0.0, %v820
    %822 = vmatmul.f32.gmra.mxu0 %v719
    %v823 = vpop.f32.mrf.mxu0
    %v824 = vadd.f32 0.0, %v823
    %825 = vmatmul.f32.gmra.mxu0 %v722
    %v826 = vpop.f32.mrf.mxu0
    %v827 = vadd.f32 0.0, %v826
    %828 = vmatmul.f32.gmra.mxu0 %v725
    %v829 = vpop.f32.mrf.mxu0
    %v830 = vadd.f32 0.0, %v829
    %831 = vmatmul.f32.gmra.mxu0 %v728
    %v832 = vpop.f32.mrf.mxu0
    %v833 = vadd.f32 0.0, %v832
    %834 = vdwg.mxu0
    %835 = vmatpush.msra.mxu0 0.0
    %836 = vmatpush.msra.mxu0 0.0
    %837 = vmatpush.msra.mxu0 0.0
    %838 = vmatpush.msra.mxu0 0.0
    %839 = vmatpush.msra.mxu0 0.0
    %840 = vmatpush.msra.mxu0 0.0
    %841 = vmatpush.msra.mxu0 0.0
    %842 = vmatpush.msra.mxu0 0.0
    %843 = vmatpush.msra.mxu0 %v157
    %844 = vmatpush.msra.mxu0 %v149
    %845 = vmatpush.msra.mxu0 %v141
    %846 = vmatpush.msra.mxu0 %v133
    %847 = vmatpush.msra.mxu0 %v125
    %848 = vmatpush.msra.mxu0 %v117
    %849 = vmatpush.msra.mxu0 %v109
    %850 = vmatpush.msra.mxu0 %v101
    %851 = vmatmul.f32.gmra.mxu0 %v713
    %v852 = vpop.f32.mrf.mxu0
    %v853 = vadd.f32 0.0, %v852
    %854 = vmatmul.f32.gmra.mxu0 %v716
    %v855 = vpop.f32.mrf.mxu0
    %v856 = vadd.f32 0.0, %v855
    %857 = vmatmul.f32.gmra.mxu0 %v719
    %v858 = vpop.f32.mrf.mxu0
    %v859 = vadd.f32 0.0, %v858
    %860 = vmatmul.f32.gmra.mxu0 %v722
    %v861 = vpop.f32.mrf.mxu0
    %v862 = vadd.f32 0.0, %v861
    %863 = vmatmul.f32.gmra.mxu0 %v725
    %v864 = vpop.f32.mrf.mxu0
    %v865 = vadd.f32 0.0, %v864
    %866 = vmatmul.f32.gmra.mxu0 %v728
    %v867 = vpop.f32.mrf.mxu0
    %v868 = vadd.f32 0.0, %v867
    %869 = vdwg.mxu0
    %870 = vmatpush.msra.mxu0 0.0
    %871 = vmatpush.msra.mxu0 0.0
    %872 = vmatpush.msra.mxu0 0.0
    %873 = vmatpush.msra.mxu0 0.0
    %874 = vmatpush.msra.mxu0 0.0
    %875 = vmatpush.msra.mxu0 0.0
    %876 = vmatpush.msra.mxu0 0.0
    %877 = vmatpush.msra.mxu0 0.0
    %878 = vmatpush.msra.mxu0 %v158
    %879 = vmatpush.msra.mxu0 %v150
    %880 = vmatpush.msra.mxu0 %v142
    %881 = vmatpush.msra.mxu0 %v134
    %882 = vmatpush.msra.mxu0 %v126
    %883 = vmatpush.msra.mxu0 %v118
    %884 = vmatpush.msra.mxu0 %v110
    %885 = vmatpush.msra.mxu0 %v102
    %886 = vmatmul.f32.gmra.mxu0 %v713
    %v887 = vpop.f32.mrf.mxu0
    %v888 = vadd.f32 0.0, %v887
    %889 = vmatmul.f32.gmra.mxu0 %v716
    %v890 = vpop.f32.mrf.mxu0
    %v891 = vadd.f32 0.0, %v890
    %892 = vmatmul.f32.gmra.mxu0 %v719
    %v893 = vpop.f32.mrf.mxu0
    %v894 = vadd.f32 0.0, %v893
    %895 = vmatmul.f32.gmra.mxu0 %v722
    %v896 = vpop.f32.mrf.mxu0
    %v897 = vadd.f32 0.0, %v896
    %898 = vmatmul.f32.gmra.mxu0 %v725
    %v899 = vpop.f32.mrf.mxu0
    %v900 = vadd.f32 0.0, %v899
    %901 = vmatmul.f32.gmra.mxu0 %v728
    %v902 = vpop.f32.mrf.mxu0
    %v903 = vadd.f32 0.0, %v902
    %904 = vdwg.mxu0
    %905 = vmatpush.msra.mxu0 0.0
    %906 = vmatpush.msra.mxu0 0.0
    %907 = vmatpush.msra.mxu0 0.0
    %908 = vmatpush.msra.mxu0 0.0
    %909 = vmatpush.msra.mxu0 0.0
    %910 = vmatpush.msra.mxu0 0.0
    %911 = vmatpush.msra.mxu0 0.0
    %912 = vmatpush.msra.mxu0 0.0
    %913 = vmatpush.msra.mxu0 %v159
    %914 = vmatpush.msra.mxu0 %v151
    %915 = vmatpush.msra.mxu0 %v143
    %916 = vmatpush.msra.mxu0 %v135
    %917 = vmatpush.msra.mxu0 %v127
    %918 = vmatpush.msra.mxu0 %v119
    %919 = vmatpush.msra.mxu0 %v111
    %920 = vmatpush.msra.mxu0 %v103
    %921 = vmatmul.f32.gmra.mxu0 %v713
    %v922 = vpop.f32.mrf.mxu0
    %v923 = vadd.f32 0.0, %v922
    %924 = vmatmul.f32.gmra.mxu0 %v716
    %v925 = vpop.f32.mrf.mxu0
    %v926 = vadd.f32 0.0, %v925
    %927 = vmatmul.f32.gmra.mxu0 %v719
    %v928 = vpop.f32.mrf.mxu0
    %v929 = vadd.f32 0.0, %v928
    %930 = vmatmul.f32.gmra.mxu0 %v722
    %v931 = vpop.f32.mrf.mxu0
    %v932 = vadd.f32 0.0, %v931
    %933 = vmatmul.f32.gmra.mxu0 %v725
    %v934 = vpop.f32.mrf.mxu0
    %v935 = vadd.f32 0.0, %v934
    %936 = vmatmul.f32.gmra.mxu0 %v728
    %v937 = vpop.f32.mrf.mxu0
    %v938 = vadd.f32 0.0, %v937
    %939 = vdwg.mxu0
    %940 = vmatpush.msra.mxu0 0.0
    %941 = vmatpush.msra.mxu0 0.0
    %942 = vmatpush.msra.mxu0 0.0
    %943 = vmatpush.msra.mxu0 0.0
    %944 = vmatpush.msra.mxu0 0.0
    %945 = vmatpush.msra.mxu0 0.0
    %946 = vmatpush.msra.mxu0 0.0
    %947 = vmatpush.msra.mxu0 0.0
    %948 = vmatpush.msra.mxu0 %v160
    %949 = vmatpush.msra.mxu0 %v152
    %950 = vmatpush.msra.mxu0 %v144
    %951 = vmatpush.msra.mxu0 %v136
    %952 = vmatpush.msra.mxu0 %v128
    %953 = vmatpush.msra.mxu0 %v120
    %954 = vmatpush.msra.mxu0 %v112
    %955 = vmatpush.msra.mxu0 %v104
    %956 = vmatmul.f32.gmra.mxu0 %v713
    %v957 = vpop.f32.mrf.mxu0
    %v958 = vadd.f32 0.0, %v957
    %959 = vmatmul.f32.gmra.mxu0 %v716
    %v960 = vpop.f32.mrf.mxu0
    %v961 = vadd.f32 0.0, %v960
    %962 = vmatmul.f32.gmra.mxu0 %v719
    %v963 = vpop.f32.mrf.mxu0
    %v964 = vadd.f32 0.0, %v963
    %965 = vmatmul.f32.gmra.mxu0 %v722
    %v966 = vpop.f32.mrf.mxu0
    %v967 = vadd.f32 0.0, %v966
    %968 = vmatmul.f32.gmra.mxu0 %v725
    %v969 = vpop.f32.mrf.mxu0
    %v970 = vadd.f32 0.0, %v969
    %971 = vmatmul.f32.gmra.mxu0 %v728
    %v972 = vpop.f32.mrf.mxu0
    %v973 = vadd.f32 0.0, %v972
    %974 = vdwg.mxu0
    %975 = vmatpush.msra.mxu0 0.0
    %976 = vmatpush.msra.mxu0 0.0
    %977 = vmatpush.msra.mxu0 0.0
    %978 = vmatpush.msra.mxu0 0.0
    %979 = vmatpush.msra.mxu0 0.0
    %980 = vmatpush.msra.mxu0 0.0
    %981 = vmatpush.msra.mxu0 0.0
    %982 = vmatpush.msra.mxu0 0.0
    %983 = vmatpush.msra.mxu0 %v161
    %984 = vmatpush.msra.mxu0 %v153
    %985 = vmatpush.msra.mxu0 %v145
    %986 = vmatpush.msra.mxu0 %v137
    %987 = vmatpush.msra.mxu0 %v129
    %988 = vmatpush.msra.mxu0 %v121
    %989 = vmatpush.msra.mxu0 %v113
    %990 = vmatpush.msra.mxu0 %v105
    %991 = vmatmul.f32.gmra.mxu0 %v713
    %v992 = vpop.f32.mrf.mxu0
    %v993 = vadd.f32 0.0, %v992
    %994 = vmatmul.f32.gmra.mxu0 %v716
    %v995 = vpop.f32.mrf.mxu0
    %v996 = vadd.f32 0.0, %v995
    %997 = vmatmul.f32.gmra.mxu0 %v719
    %v998 = vpop.f32.mrf.mxu0
    %v999 = vadd.f32 0.0, %v998
    %1000 = vmatmul.f32.gmra.mxu0 %v722
    %v1001 = vpop.f32.mrf.mxu0
    %v1002 = vadd.f32 0.0, %v1001
    %1003 = vmatmul.f32.gmra.mxu0 %v725
    %v1004 = vpop.f32.mrf.mxu0
    %v1005 = vadd.f32 0.0, %v1004
    %1006 = vmatmul.f32.gmra.mxu0 %v728
    %v1007 = vpop.f32.mrf.mxu0
    %v1008 = vadd.f32 0.0, %v1007
    %1009 = vdwg.mxu0
    %v1010 = vmul.f32 %v50, %v748
    %v1011 = vmul.f32 %v51, %v783
    %v1012 = vmul.f32 %v52, %v818
    %v1013 = vmul.f32 %v53, %v853
    %v1014 = vmul.f32 %v54, %v888
    %v1015 = vmul.f32 %v55, %v923
    %v1016 = vmul.f32 %v56, %v958
    %v1017 = vmul.f32 %v57, %v993
    %v1018 = vmul.f32 %v58, %v751
    %v1019 = vmul.f32 %v59, %v786
    %v1020 = vmul.f32 %v60, %v821
    %v1021 = vmul.f32 %v61, %v856
    %v1022 = vmul.f32 %v62, %v891
    %v1023 = vmul.f32 %v63, %v926
    %v1024 = vmul.f32 %v64, %v961
    %v1025 = vmul.f32 %v65, %v996
    %v1026 = vmul.f32 %v66, %v754
    %v1027 = vmul.f32 %v67, %v789
    %v1028 = vmul.f32 %v68, %v824
    %v1029 = vmul.f32 %v69, %v859
    %v1030 = vmul.f32 %v70, %v894
    %v1031 = vmul.f32 %v71, %v929
    %v1032 = vmul.f32 %v72, %v964
    %v1033 = vmul.f32 %v73, %v999
    %v1034 = vmul.f32 %v74, %v757
    %v1035 = vmul.f32 %v75, %v792
    %v1036 = vmul.f32 %v76, %v827
    %v1037 = vmul.f32 %v77, %v862
    %v1038 = vmul.f32 %v78, %v897
    %v1039 = vmul.f32 %v79, %v932
    %v1040 = vmul.f32 %v80, %v967
    %v1041 = vmul.f32 %v81, %v1002
    %v1042 = vmul.f32 %v82, %v760
    %v1043 = vmul.f32 %v83, %v795
    %v1044 = vmul.f32 %v84, %v830
    %v1045 = vmul.f32 %v85, %v865
    %v1046 = vmul.f32 %v86, %v900
    %v1047 = vmul.f32 %v87, %v935
    %v1048 = vmul.f32 %v88, %v970
    %v1049 = vmul.f32 %v89, %v1005
    %v1050 = vmul.f32 %v90, %v763
    %v1051 = vmul.f32 %v91, %v798
    %v1052 = vmul.f32 %v92, %v833
    %v1053 = vmul.f32 %v93, %v868
    %v1054 = vmul.f32 %v94, %v903
    %v1055 = vmul.f32 %v95, %v938
    %v1056 = vmul.f32 %v96, %v973
    %v1057 = vmul.f32 %v97, %v1008
    %1058 = vst [vmem:[#allocation7] sm:$0xff] %v1010
    %1059 = vst [vmem:[#allocation7 + $0x8] sm:$0xff] %v1011
    %1060 = vst [vmem:[#allocation7 + $0x10] sm:$0xff] %v1012
    %1061 = vst [vmem:[#allocation7 + $0x18] sm:$0xff] %v1013
    %1062 = vst [vmem:[#allocation7 + $0x20] sm:$0xff] %v1014
    %1063 = vst [vmem:[#allocation7 + $0x28] sm:$0xff] %v1015
    %1064 = vst [vmem:[#allocation7 + $0x30] sm:$0xff] %v1016
    %1065 = vst [vmem:[#allocation7 + $0x38] sm:$0xff] %v1017
    %1066 = vst [vmem:[#allocation7 + $0x40] sm:$0xff] %v1018
    %1067 = vst [vmem:[#allocation7 + $0x48] sm:$0xff] %v1019
    %1068 = vst [vmem:[#allocation7 + $0x50] sm:$0xff] %v1020
    %1069 = vst [vmem:[#allocation7 + $0x58] sm:$0xff] %v1021
    %1070 = vst [vmem:[#allocation7 + $0x60] sm:$0xff] %v1022
    %1071 = vst [vmem:[#allocation7 + $0x68] sm:$0xff] %v1023
    %1072 = vst [vmem:[#allocation7 + $0x70] sm:$0xff] %v1024
    %1073 = vst [vmem:[#allocation7 + $0x78] sm:$0xff] %v1025
    %1074 = vst [vmem:[#allocation7 + $0x80] sm:$0xff] %v1026
    %1075 = vst [vmem:[#allocation7 + $0x88] sm:$0xff] %v1027
    %1076 = vst [vmem:[#allocation7 + $0x90] sm:$0xff] %v1028
    %1077 = vst [vmem:[#allocation7 + $0x98] sm:$0xff] %v1029
    %1078 = vst [vmem:[#allocation7 + $0xa0] sm:$0xff] %v1030
    %1079 = vst [vmem:[#allocation7 + $0xa8] sm:$0xff] %v1031
    %1080 = vst [vmem:[#allocation7 + $0xb0] sm:$0xff] %v1032
    %1081 = vst [vmem:[#allocation7 + $0xb8] sm:$0xff] %v1033
    %1082 = vst [vmem:[#allocation7 + $0xc0] sm:$0xff] %v1034
    %1083 = vst [vmem:[#allocation7 + $0xc8] sm:$0xff] %v1035
    %1084 = vst [vmem:[#allocation7 + $0xd0] sm:$0xff] %v1036
    %1085 = vst [vmem:[#allocation7 + $0xd8] sm:$0xff] %v1037
    %1086 = vst [vmem:[#allocation7 + $0xe0] sm:$0xff] %v1038
    %1087 = vst [vmem:[#allocation7 + $0xe8] sm:$0xff] %v1039
    %1088 = vst [vmem:[#allocation7 + $0xf0] sm:$0xff] %v1040
    %1089 = vst [vmem:[#allocation7 + $0xf8] sm:$0xff] %v1041
    %1090 = vst [vmem:[#allocation7 + $0x100] sm:$0xff] %v1042
    %1091 = vst [vmem:[#allocation7 + $0x108] sm:$0xff] %v1043
    %1092 = vst [vmem:[#allocation7 + $0x110] sm:$0xff] %v1044
    %1093 = vst [vmem:[#allocation7 + $0x118] sm:$0xff] %v1045
    %1094 = vst [vmem:[#allocation7 + $0x120] sm:$0xff] %v1046
    %1095 = vst [vmem:[#allocation7 + $0x128] sm:$0xff] %v1047
    %1096 = vst [vmem:[#allocation7 + $0x130] sm:$0xff] %v1048
    %1097 = vst [vmem:[#allocation7 + $0x138] sm:$0xff] %v1049
    %1098 = vst [vmem:[#allocation7 + $0x140] sm:$0xff] %v1050
    %1099 = vst [vmem:[#allocation7 + $0x148] sm:$0xff] %v1051
    %1100 = vst [vmem:[#allocation7 + $0x150] sm:$0xff] %v1052
    %1101 = vst [vmem:[#allocation7 + $0x158] sm:$0xff] %v1053
    %1102 = vst [vmem:[#allocation7 + $0x160] sm:$0xff] %v1054
    %1103 = vst [vmem:[#allocation7 + $0x168] sm:$0xff] %v1055
    %1104 = vst [vmem:[#allocation7 + $0x170] sm:$0xff] %v1056
    %1105 = vst [vmem:[#allocation7 + $0x178] sm:$0xff] %v1057
    // Predicated region
    $region26: #{tpu_custom_call.1} parent=1 // pred_check
      _
    $region27: #{tpu_custom_call.1} parent=1 // pred_check_branch
      %1107 = sbr.rel (0) target = $region29
    $region28: #{tpu_custom_call.1} parent=1 // pred_region
      %1109 = vsyncadd [#allocation4], 0
      %s1110 = sshll.u32 [#allocation7], 4
      %s1111 = int_to_ptr.vmem [resolvable:$true] %s1110
      %s1112 = sshll.u32 %s4, 4
      %s1113 = int_to_ptr.hbm [resolvable:$true] %s1112
      %1118 = dma.vmem_to_hbm [thread:$0]  %s1111, 6144, %s1113, [#allocation4], 1024, 1024, 64
    $region29: #{tpu_custom_call.1} parent=1 // pred_fallthru
      _
    // Predicated region
    $region30: #{tpu_custom_call.1} parent=1 // pred_check
      _
    $region31: #{tpu_custom_call.1} parent=1 // pred_check_branch
      %1120 = sbr.rel (0) target = $region33
    $region32: #{tpu_custom_call.1} parent=1 // pred_region
      %1122 = dma.done [#allocation4], 6144
    $region33: #{tpu_custom_call.1} parent=1 // pred_fallthru
      _
    %1123 = vsyncpa [#allocation3], 1
    %1124 = vsyncpa [#allocation6], 1
    %1125 = vsyncpa [#allocation4], 1

// kernel: tpu_custom_call.1
$region0: #{tpu_custom_call.1}
  #allocation0 [shape = 'u32[]', space=smem, size = 0x4, offset = 0x4, fixed_abs, tag = 'smem constant byte address 0x4 - core index']
  #allocation1 [shape = 'u32[72,128]{1,0:T(1,128)}', space=vmem, size = 0x9000, scoped, tag = 'internal scratch']
  %s0 = inlined_call_operand.hbm [shape: f32[48,1024], index: 0, kind: input, shape index: {}]
  %s1 = inlined_call_operand.hbm [shape: f32[64,1024], index: 1, kind: input, shape index: {}]
  %s2 = inlined_call_operand.vmem [shape: f32[4,64], index: 2, kind: input, shape index: {}]
  %s3 = inlined_call_operand.vmem [shape: f32[64,4], index: 3, kind: input, shape index: {}]
  %s4 = inlined_call_operand.hbm [shape: f32[48,1024], index: 4, kind: output, shape index: {}]
  %s5 = sld [smem:[#allocation0]]
  $region34: #{tpu_custom_call.1} parent=0
    _
  %s7 = ssub.s32 1, %s5
  %s8 = scalar_select 0, %s7, %s5
  $region1: #{tpu_custom_call.1} parent=0
    #allocation2 [shape = 'u8[196608]{0}', space=vmem, size = 0x30000, scoped, tag = 'input window, operand 0, single buffered']
    #allocation3 [shape = 's32[1]{0}', space=sflag, size = 0x4, scoped, tag = 'scoped memory for tpu_custom_call.1']
    #allocation4 [shape = 's32[1]{0}', space=sflag, size = 0x4, scoped, tag = 'scoped memory for tpu_custom_call.1']
    #allocation5 [shape = 'u8[262144]{0}', space=vmem, size = 0x40000, scoped, tag = 'input window, operand 1, single buffered']
    #allocation6 [shape = 's32[1]{0}', space=sflag, size = 0x4, scoped, tag = 'scoped memory for tpu_custom_call.1']
    #allocation7 [shape = 'u8[196608]{0}', space=vmem, size = 0x30000, scoped, tag = 'output window, operand 0, single buffered']
    %9 = vsyncpa [#allocation3], 0
    %10 = vsyncpa [#allocation6], 0
    %11 = vsyncpa [#allocation4], 0
    // Predicated region
    $region2: #{tpu_custom_call.1} parent=1 // pred_check
      _
    $region3: #{tpu_custom_call.1} parent=1 // pred_check_branch
      %13 = sbr.rel (0) target = $region5
    $region4: #{tpu_custom_call.1} parent=1 // pred_region
      %15 = vsyncadd [#allocation3], 0
      %s16 = sshll.u32 %s0, 4
      %s17 = int_to_ptr.hbm [resolvable:$true] %s16
      %s18 = sshll.u32 [#allocation2], 4
      %s19 = int_to_ptr.vmem [resolvable:$true] %s18
      %24 = dma.hbm_to_vmem [thread:$0]  %s17, 6144, %s19, [#allocation3], 1024, 1024, 64
    $region5: #{tpu_custom_call.1} parent=1 // pred_fallthru
      _
    // Predicated region
    $region6: #{tpu_custom_call.1} parent=1 // pred_check
      _
    $region7: #{tpu_custom_call.1} parent=1 // pred_check_branch
      %26 = sbr.rel (0) target = $region9
    $region8: #{tpu_custom_call.1} parent=1 // pred_region
      %28 = vsyncadd [#allocation6], 0
      %s29 = sshll.u32 %s1, 4
      %s30 = int_to_ptr.hbm [resolvable:$true] %s29
      %s31 = sshll.u32 [#allocation5], 4
      %s32 = int_to_ptr.vmem [resolvable:$true] %s31
      %37 = dma.hbm_to_vmem [thread:$0]  %s30, 8192, %s32, [#allocation6], 1024, 1024, 64
    $region9: #{tpu_custom_call.1} parent=1 // pred_fallthru
      _
    // Predicated region
    $region10: #{tpu_custom_call.1} parent=1 // pred_check
      _
    $region11: #{tpu_custom_call.1} parent=1 // pred_check_branch
      %39 = sbr.rel (0) target = $region13
    $region12: #{tpu_custom_call.1} parent=1 // pred_region
      _
    $region13: #{tpu_custom_call.1} parent=1 // pred_fallthru
      _
    // Predicated region
    $region14: #{tpu_custom_call.1} parent=1 // pred_check
      _
    $region15: #{tpu_custom_call.1} parent=1 // pred_check_branch
      %41 = sbr.rel (0) target = $region17
    $region16: #{tpu_custom_call.1} parent=1 // pred_region
      _
    $region17: #{tpu_custom_call.1} parent=1 // pred_fallthru
      _
    // Predicated region
    $region18: #{tpu_custom_call.1} parent=1 // pred_check
      _
    $region19: #{tpu_custom_call.1} parent=1 // pred_check_branch
      %43 = sbr.rel (0) target = $region21
    $region20: #{tpu_custom_call.1} parent=1 // pred_region
      %45 = dma.done [#allocation3], 6144
    $region21: #{tpu_custom_call.1} parent=1 // pred_fallthru
      _
    // Predicated region
    $region22: #{tpu_custom_call.1} parent=1 // pred_check
      _
    $region23: #{tpu_custom_call.1} parent=1 // pred_check_branch
      %47 = sbr.rel (0) target = $region25
    $region24: #{tpu_custom_call.1} parent=1 // pred_region
      %49 = dma.done [#allocation6], 8192
    $region25: #{tpu_custom_call.1} parent=1 // pred_fallthru
      _
    %v50 = vld [vmem:[#allocation2] sm:$0xff]
    %v51 = vld [vmem:[#allocation2 + $0x8] sm:$0xff]
    %v52 = vld [vmem:[#allocation2 + $0x10] sm:$0xff]
    %v53 = vld [vmem:[#allocation2 + $0x18] sm:$0xff]
    %v54 = vld [vmem:[#allocation2 + $0x20] sm:$0xff]
    %v55 = vld [vmem:[#allocation2 + $0x28] sm:$0xff]
    %v56 = vld [vmem:[#allocation2 + $0x30] sm:$0xff]
    %v57 = vld [vmem:[#allocation2 + $0x38] sm:$0xff]
    %v58 = vld [vmem:[#allocation2 + $0x40] sm:$0xff]
    %v59 = vld [vmem:[#allocation2 + $0x48] sm:$0xff]
    %v60 = vld [vmem:[#allocation2 + $0x50] sm:$0xff]
    %v61 = vld [vmem:[#allocation2 + $0x58] sm:$0xff]
    %v62 = vld [vmem:[#allocation2 + $0x60] sm:$0xff]
    %v63 = vld [vmem:[#allocation2 + $0x68] sm:$0xff]
    %v64 = vld [vmem:[#allocation2 + $0x70] sm:$0xff]
    %v65 = vld [vmem:[#allocation2 + $0x78] sm:$0xff]
    %v66 = vld [vmem:[#allocation2 + $0x80] sm:$0xff]
    %v67 = vld [vmem:[#allocation2 + $0x88] sm:$0xff]
    %v68 = vld [vmem:[#allocation2 + $0x90] sm:$0xff]
    %v69 = vld [vmem:[#allocation2 + $0x98] sm:$0xff]
    %v70 = vld [vmem:[#allocation2 + $0xa0] sm:$0xff]
    %v71 = vld [vmem:[#allocation2 + $0xa8] sm:$0xff]
    %v72 = vld [vmem:[#allocation2 + $0xb0] sm:$0xff]
    %v73 = vld [vmem:[#allocation2 + $0xb8] sm:$0xff]
    %v74 = vld [vmem:[#allocation2 + $0xc0] sm:$0xff]
    %v75 = vld [vmem:[#allocation2 + $0xc8] sm:$0xff]
    %v76 = vld [vmem:[#allocation2 + $0xd0] sm:$0xff]
    %v77 = vld [vmem:[#allocation2 + $0xd8] sm:$0xff]
    %v78 = vld [vmem:[#allocation2 + $0xe0] sm:$0xff]
    %v79 = vld [vmem:[#allocation2 + $0xe8] sm:$0xff]
    %v80 = vld [vmem:[#allocation2 + $0xf0] sm:$0xff]
    %v81 = vld [vmem:[#allocation2 + $0xf8] sm:$0xff]
    %v82 = vld [vmem:[#allocation2 + $0x100] sm:$0xff]
    %v83 = vld [vmem:[#allocation2 + $0x108] sm:$0xff]
    %v84 = vld [vmem:[#allocation2 + $0x110] sm:$0xff]
    %v85 = vld [vmem:[#allocation2 + $0x118] sm:$0xff]
    %v86 = vld [vmem:[#allocation2 + $0x120] sm:$0xff]
    %v87 = vld [vmem:[#allocation2 + $0x128] sm:$0xff]
    %v88 = vld [vmem:[#allocation2 + $0x130] sm:$0xff]
    %v89 = vld [vmem:[#allocation2 + $0x138] sm:$0xff]
    %v90 = vld [vmem:[#allocation2 + $0x140] sm:$0xff]
    %v91 = vld [vmem:[#allocation2 + $0x148] sm:$0xff]
    %v92 = vld [vmem:[#allocation2 + $0x150] sm:$0xff]
    %v93 = vld [vmem:[#allocation2 + $0x158] sm:$0xff]
    %v94 = vld [vmem:[#allocation2 + $0x160] sm:$0xff]
    %v95 = vld [vmem:[#allocation2 + $0x168] sm:$0xff]
    %v96 = vld [vmem:[#allocation2 + $0x170] sm:$0xff]
    %v97 = vld [vmem:[#allocation2 + $0x178] sm:$0xff]
    %v98 = vld [vmem:[#allocation5] sm:$0xff]
    %v99 = vld [vmem:[#allocation5 + $0x8] sm:$0xff]
    %v100 = vld [vmem:[#allocation5 + $0x10] sm:$0xff]
    %v101 = vld [vmem:[#allocation5 + $0x18] sm:$0xff]
    %v102 = vld [vmem:[#allocation5 + $0x20] sm:$0xff]
    %v103 = vld [vmem:[#allocation5 + $0x28] sm:$0xff]
    %v104 = vld [vmem:[#allocation5 + $0x30] sm:$0xff]
    %v105 = vld [vmem:[#allocation5 + $0x38] sm:$0xff]
    %v106 = vld [vmem:[#allocation5 + $0x40] sm:$0xff]
    %v107 = vld [vmem:[#allocation5 + $0x48] sm:$0xff]
    %v108 = vld [vmem:[#allocation5 + $0x50] sm:$0xff]
    %v109 = vld [vmem:[#allocation5 + $0x58] sm:$0xff]
    %v110 = vld [vmem:[#allocation5 + $0x60] sm:$0xff]
    %v111 = vld [vmem:[#allocation5 + $0x68] sm:$0xff]
    %v112 = vld [vmem:[#allocation5 + $0x70] sm:$0xff]
    %v113 = vld [vmem:[#allocation5 + $0x78] sm:$0xff]
    %v114 = vld [vmem:[#allocation5 + $0x80] sm:$0xff]
    %v115 = vld [vmem:[#allocation5 + $0x88] sm:$0xff]
    %v116 = vld [vmem:[#allocation5 + $0x90] sm:$0xff]
    %v117 = vld [vmem:[#allocation5 + $0x98] sm:$0xff]
    %v118 = vld [vmem:[#allocation5 + $0xa0] sm:$0xff]
    %v119 = vld [vmem:[#allocation5 + $0xa8] sm:$0xff]
    %v120 = vld [vmem:[#allocation5 + $0xb0] sm:$0xff]
    %v121 = vld [vmem:[#allocation5 + $0xb8] sm:$0xff]
    %v122 = vld [vmem:[#allocation5 + $0xc0] sm:$0xff]
    %v123 = vld [vmem:[#allocation5 + $0xc8] sm:$0xff]
    %v124 = vld [vmem:[#allocation5 + $0xd0] sm:$0xff]
    %v125 = vld [vmem:[#allocation5 + $0xd8] sm:$0xff]
    %v126 = vld [vmem:[#allocation5 + $0xe0] sm:$0xff]
    %v127 = vld [vmem:[#allocation5 + $0xe8] sm:$0xff]
    %v128 = vld [vmem:[#allocation5 + $0xf0] sm:$0xff]
    %v129 = vld [vmem:[#allocation5 + $0xf8] sm:$0xff]
    %v130 = vld [vmem:[#allocation5 + $0x100] sm:$0xff]
    %v131 = vld [vmem:[#allocation5 + $0x108] sm:$0xff]
    %v132 = vld [vmem:[#allocation5 + $0x110] sm:$0xff]
    %v133 = vld [vmem:[#allocation5 + $0x118] sm:$0xff]
    %v134 = vld [vmem:[#allocation5 + $0x120] sm:$0xff]
    %v135 = vld [vmem:[#allocation5 + $0x128] sm:$0xff]
    %v136 = vld [vmem:[#allocation5 + $0x130] sm:$0xff]
    %v137 = vld [vmem:[#allocation5 + $0x138] sm:$0xff]
    %v138 = vld [vmem:[#allocation5 + $0x140] sm:$0xff]
    %v139 = vld [vmem:[#allocation5 + $0x148] sm:$0xff]
    %v140 = vld [vmem:[#allocation5 + $0x150] sm:$0xff]
    %v141 = vld [vmem:[#allocation5 + $0x158] sm:$0xff]
    %v142 = vld [vmem:[#allocation5 + $0x160] sm:$0xff]
    %v143 = vld [vmem:[#allocation5 + $0x168] sm:$0xff]
    %v144 = vld [vmem:[#allocation5 + $0x170] sm:$0xff]
    %v145 = vld [vmem:[#allocation5 + $0x178] sm:$0xff]
    %v146 = vld [vmem:[#allocation5 + $0x180] sm:$0xff]
    %v147 = vld [vmem:[#allocation5 + $0x188] sm:$0xff]
    %v148 = vld [vmem:[#allocation5 + $0x190] sm:$0xff]
    %v149 = vld [vmem:[#allocation5 + $0x198] sm:$0xff]
    %v150 = vld [vmem:[#allocation5 + $0x1a0] sm:$0xff]
    %v151 = vld [vmem:[#allocation5 + $0x1a8] sm:$0xff]
    %v152 = vld [vmem:[#allocation5 + $0x1b0] sm:$0xff]
    %v153 = vld [vmem:[#allocation5 + $0x1b8] sm:$0xff]
    %v154 = vld [vmem:[#allocation5 + $0x1c0] sm:$0xff]
    %v155 = vld [vmem:[#allocation5 + $0x1c8] sm:$0xff]
    %v156 = vld [vmem:[#allocation5 + $0x1d0] sm:$0xff]
    %v157 = vld [vmem:[#allocation5 + $0x1d8] sm:$0xff]
    %v158 = vld [vmem:[#allocation5 + $0x1e0] sm:$0xff]
    %v159 = vld [vmem:[#allocation5 + $0x1e8] sm:$0xff]
    %v160 = vld [vmem:[#allocation5 + $0x1f0] sm:$0xff]
    %v161 = vld [vmem:[#allocation5 + $0x1f8] sm:$0xff]
    %162 = vmatpush.xpose.msra.mxu0 0.0
    %163 = vmatpush.xpose.msra.mxu0 0.0
    %164 = vmatpush.xpose.msra.mxu0 0.0
    %165 = vmatpush.xpose.msra.mxu0 0.0
    %166 = vmatpush.xpose.msra.mxu0 0.0
    %167 = vmatpush.xpose.msra.mxu0 0.0
    %168 = vmatpush.xpose.msra.mxu0 0.0
    %169 = vmatpush.xpose.msra.mxu0 0.0
    %170 = vmatpush.xpose.msra.mxu0 %v154
    %171 = vmatpush.xpose.msra.mxu0 %v146
    %172 = vmatpush.xpose.msra.mxu0 %v138
    %173 = vmatpush.xpose.msra.mxu0 %v130
    %174 = vmatpush.xpose.msra.mxu0 %v122
    %175 = vmatpush.xpose.msra.mxu0 %v114
    %176 = vmatpush.xpose.msra.mxu0 %v106
    %177 = vmatpush.xpose.msra.mxu0 %v98
    %178 = vmatmul.f32.gmra.mxu0 %v50
    %v179 = vpop.f32.mrf.mxu0
    %v180 = vadd.f32 0.0, %v179
    %181 = vmatmul.f32.gmra.mxu0 %v58
    %v182 = vpop.f32.mrf.mxu0
    %v183 = vadd.f32 0.0, %v182
    %184 = vmatmul.f32.gmra.mxu0 %v66
    %v185 = vpop.f32.mrf.mxu0
    %v186 = vadd.f32 0.0, %v185
    %187 = vmatmul.f32.gmra.mxu0 %v74
    %v188 = vpop.f32.mrf.mxu0
    %v189 = vadd.f32 0.0, %v188
    %190 = vmatmul.f32.gmra.mxu0 %v82
    %v191 = vpop.f32.mrf.mxu0
    %v192 = vadd.f32 0.0, %v191
    %193 = vmatmul.f32.gmra.mxu0 %v90
    %v194 = vpop.f32.mrf.mxu0
    %v195 = vadd.f32 0.0, %v194
    %196 = vdwg.mxu0
    %197 = vmatpush.xpose.msra.mxu0 0.0
    %198 = vmatpush.xpose.msra.mxu0 0.0
    %199 = vmatpush.xpose.msra.mxu0 0.0
    %200 = vmatpush.xpose.msra.mxu0 0.0
    %201 = vmatpush.xpose.msra.mxu0 0.0
    %202 = vmatpush.xpose.msra.mxu0 0.0
    %203 = vmatpush.xpose.msra.mxu0 0.0
    %204 = vmatpush.xpose.msra.mxu0 0.0
    %205 = vmatpush.xpose.msra.mxu0 %v155
    %206 = vmatpush.xpose.msra.mxu0 %v147
    %207 = vmatpush.xpose.msra.mxu0 %v139
    %208 = vmatpush.xpose.msra.mxu0 %v131
    %209 = vmatpush.xpose.msra.mxu0 %v123
    %210 = vmatpush.xpose.msra.mxu0 %v115
    %211 = vmatpush.xpose.msra.mxu0 %v107
    %212 = vmatpush.xpose.msra.mxu0 %v99
    %213 = vmatmul.f32.gmra.mxu0 %v51
    %v214 = vpop.f32.mrf.mxu0
    %v215 = vadd.f32 %v180, %v214
    %216 = vmatmul.f32.gmra.mxu0 %v59
    %v217 = vpop.f32.mrf.mxu0
    %v218 = vadd.f32 %v183, %v217
    %219 = vmatmul.f32.gmra.mxu0 %v67
    %v220 = vpop.f32.mrf.mxu0
    %v221 = vadd.f32 %v186, %v220
    %222 = vmatmul.f32.gmra.mxu0 %v75
    %v223 = vpop.f32.mrf.mxu0
    %v224 = vadd.f32 %v189, %v223
    %225 = vmatmul.f32.gmra.mxu0 %v83
    %v226 = vpop.f32.mrf.mxu0
    %v227 = vadd.f32 %v192, %v226
    %228 = vmatmul.f32.gmra.mxu0 %v91
    %v229 = vpop.f32.mrf.mxu0
    %v230 = vadd.f32 %v195, %v229
    %231 = vdwg.mxu0
    %232 = vmatpush.xpose.msra.mxu0 0.0
    %233 = vmatpush.xpose.msra.mxu0 0.0
    %234 = vmatpush.xpose.msra.mxu0 0.0
    %235 = vmatpush.xpose.msra.mxu0 0.0
    %236 = vmatpush.xpose.msra.mxu0 0.0
    %237 = vmatpush.xpose.msra.mxu0 0.0
    %238 = vmatpush.xpose.msra.mxu0 0.0
    %239 = vmatpush.xpose.msra.mxu0 0.0
    %240 = vmatpush.xpose.msra.mxu0 %v156
    %241 = vmatpush.xpose.msra.mxu0 %v148
    %242 = vmatpush.xpose.msra.mxu0 %v140
    %243 = vmatpush.xpose.msra.mxu0 %v132
    %244 = vmatpush.xpose.msra.mxu0 %v124
    %245 = vmatpush.xpose.msra.mxu0 %v116
    %246 = vmatpush.xpose.msra.mxu0 %v108
    %247 = vmatpush.xpose.msra.mxu0 %v100
    %248 = vmatmul.f32.gmra.mxu0 %v52
    %v249 = vpop.f32.mrf.mxu0
    %v250 = vadd.f32 %v215, %v249
    %251 = vmatmul.f32.gmra.mxu0 %v60
    %v252 = vpop.f32.mrf.mxu0
    %v253 = vadd.f32 %v218, %v252
    %254 = vmatmul.f32.gmra.mxu0 %v68
    %v255 = vpop.f32.mrf.mxu0
    %v256 = vadd.f32 %v221, %v255
    %257 = vmatmul.f32.gmra.mxu0 %v76
    %v258 = vpop.f32.mrf.mxu0
    %v259 = vadd.f32 %v224, %v258
    %260 = vmatmul.f32.gmra.mxu0 %v84
    %v261 = vpop.f32.mrf.mxu0
    %v262 = vadd.f32 %v227, %v261
    %263 = vmatmul.f32.gmra.mxu0 %v92
    %v264 = vpop.f32.mrf.mxu0
    %v265 = vadd.f32 %v230, %v264
    %266 = vdwg.mxu0
    %267 = vmatpush.xpose.msra.mxu0 0.0
    %268 = vmatpush.xpose.msra.mxu0 0.0
    %269 = vmatpush.xpose.msra.mxu0 0.0
    %270 = vmatpush.xpose.msra.mxu0 0.0
    %271 = vmatpush.xpose.msra.mxu0 0.0
    %272 = vmatpush.xpose.msra.mxu0 0.0
    %273 = vmatpush.xpose.msra.mxu0 0.0
    %274 = vmatpush.xpose.msra.mxu0 0.0
    %275 = vmatpush.xpose.msra.mxu0 %v157
    %276 = vmatpush.xpose.msra.mxu0 %v149
    %277 = vmatpush.xpose.msra.mxu0 %v141
    %278 = vmatpush.xpose.msra.mxu0 %v133
    %279 = vmatpush.xpose.msra.mxu0 %v125
    %280 = vmatpush.xpose.msra.mxu0 %v117
    %281 = vmatpush.xpose.msra.mxu0 %v109
    %282 = vmatpush.xpose.msra.mxu0 %v101
    %283 = vmatmul.f32.gmra.mxu0 %v53
    %v284 = vpop.f32.mrf.mxu0
    %v285 = vadd.f32 %v250, %v284
    %286 = vmatmul.f32.gmra.mxu0 %v61
    %v287 = vpop.f32.mrf.mxu0
    %v288 = vadd.f32 %v253, %v287
    %289 = vmatmul.f32.gmra.mxu0 %v69
    %v290 = vpop.f32.mrf.mxu0
    %v291 = vadd.f32 %v256, %v290
    %292 = vmatmul.f32.gmra.mxu0 %v77
    %v293 = vpop.f32.mrf.mxu0
    %v294 = vadd.f32 %v259, %v293
    %295 = vmatmul.f32.gmra.mxu0 %v85
    %v296 = vpop.f32.mrf.mxu0
    %v297 = vadd.f32 %v262, %v296
    %298 = vmatmul.f32.gmra.mxu0 %v93
    %v299 = vpop.f32.mrf.mxu0
    %v300 = vadd.f32 %v265, %v299
    %301 = vdwg.mxu0
    %302 = vmatpush.xpose.msra.mxu0 0.0
    %303 = vmatpush.xpose.msra.mxu0 0.0
    %304 = vmatpush.xpose.msra.mxu0 0.0
    %305 = vmatpush.xpose.msra.mxu0 0.0
    %306 = vmatpush.xpose.msra.mxu0 0.0
    %307 = vmatpush.xpose.msra.mxu0 0.0
    %308 = vmatpush.xpose.msra.mxu0 0.0
    %309 = vmatpush.xpose.msra.mxu0 0.0
    %310 = vmatpush.xpose.msra.mxu0 %v158
    %311 = vmatpush.xpose.msra.mxu0 %v150
    %312 = vmatpush.xpose.msra.mxu0 %v142
    %313 = vmatpush.xpose.msra.mxu0 %v134
    %314 = vmatpush.xpose.msra.mxu0 %v126
    %315 = vmatpush.xpose.msra.mxu0 %v118
    %316 = vmatpush.xpose.msra.mxu0 %v110
    %317 = vmatpush.xpose.msra.mxu0 %v102
    %318 = vmatmul.f32.gmra.mxu0 %v54
    %v319 = vpop.f32.mrf.mxu0
    %v320 = vadd.f32 %v285, %v319
    %321 = vmatmul.f32.gmra.mxu0 %v62
    %v322 = vpop.f32.mrf.mxu0
    %v323 = vadd.f32 %v288, %v322
    %324 = vmatmul.f32.gmra.mxu0 %v70
    %v325 = vpop.f32.mrf.mxu0
    %v326 = vadd.f32 %v291, %v325
    %327 = vmatmul.f32.gmra.mxu0 %v78
    %v328 = vpop.f32.mrf.mxu0
    %v329 = vadd.f32 %v294, %v328
    %330 = vmatmul.f32.gmra.mxu0 %v86
    %v331 = vpop.f32.mrf.mxu0
    %v332 = vadd.f32 %v297, %v331
    %333 = vmatmul.f32.gmra.mxu0 %v94
    %v334 = vpop.f32.mrf.mxu0
    %v335 = vadd.f32 %v300, %v334
    %336 = vdwg.mxu0
    %337 = vmatpush.xpose.msra.mxu0 0.0
    %338 = vmatpush.xpose.msra.mxu0 0.0
    %339 = vmatpush.xpose.msra.mxu0 0.0
    %340 = vmatpush.xpose.msra.mxu0 0.0
    %341 = vmatpush.xpose.msra.mxu0 0.0
    %342 = vmatpush.xpose.msra.mxu0 0.0
    %343 = vmatpush.xpose.msra.mxu0 0.0
    %344 = vmatpush.xpose.msra.mxu0 0.0
    %345 = vmatpush.xpose.msra.mxu0 %v159
    %346 = vmatpush.xpose.msra.mxu0 %v151
    %347 = vmatpush.xpose.msra.mxu0 %v143
    %348 = vmatpush.xpose.msra.mxu0 %v135
    %349 = vmatpush.xpose.msra.mxu0 %v127
    %350 = vmatpush.xpose.msra.mxu0 %v119
    %351 = vmatpush.xpose.msra.mxu0 %v111
    %352 = vmatpush.xpose.msra.mxu0 %v103
    %353 = vmatmul.f32.gmra.mxu0 %v55
    %v354 = vpop.f32.mrf.mxu0
    %v355 = vadd.f32 %v320, %v354
    %356 = vmatmul.f32.gmra.mxu0 %v63
    %v357 = vpop.f32.mrf.mxu0
    %v358 = vadd.f32 %v323, %v357
    %359 = vmatmul.f32.gmra.mxu0 %v71
    %v360 = vpop.f32.mrf.mxu0
    %v361 = vadd.f32 %v326, %v360
    %362 = vmatmul.f32.gmra.mxu0 %v79
    %v363 = vpop.f32.mrf.mxu0
    %v364 = vadd.f32 %v329, %v363
    %365 = vmatmul.f32.gmra.mxu0 %v87
    %v366 = vpop.f32.mrf.mxu0
    %v367 = vadd.f32 %v332, %v366
    %368 = vmatmul.f32.gmra.mxu0 %v95
    %v369 = vpop.f32.mrf.mxu0
    %v370 = vadd.f32 %v335, %v369
    %371 = vdwg.mxu0
    %372 = vmatpush.xpose.msra.mxu0 0.0
    %373 = vmatpush.xpose.msra.mxu0 0.0
    %374 = vmatpush.xpose.msra.mxu0 0.0
    %375 = vmatpush.xpose.msra.mxu0 0.0
    %376 = vmatpush.xpose.msra.mxu0 0.0
    %377 = vmatpush.xpose.msra.mxu0 0.0
    %378 = vmatpush.xpose.msra.mxu0 0.0
    %379 = vmatpush.xpose.msra.mxu0 0.0
    %380 = vmatpush.xpose.msra.mxu0 %v160
    %381 = vmatpush.xpose.msra.mxu0 %v152
    %382 = vmatpush.xpose.msra.mxu0 %v144
    %383 = vmatpush.xpose.msra.mxu0 %v136
    %384 = vmatpush.xpose.msra.mxu0 %v128
    %385 = vmatpush.xpose.msra.mxu0 %v120
    %386 = vmatpush.xpose.msra.mxu0 %v112
    %387 = vmatpush.xpose.msra.mxu0 %v104
    %388 = vmatmul.f32.gmra.mxu0 %v56
    %v389 = vpop.f32.mrf.mxu0
    %v390 = vadd.f32 %v355, %v389
    %391 = vmatmul.f32.gmra.mxu0 %v64
    %v392 = vpop.f32.mrf.mxu0
    %v393 = vadd.f32 %v358, %v392
    %394 = vmatmul.f32.gmra.mxu0 %v72
    %v395 = vpop.f32.mrf.mxu0
    %v396 = vadd.f32 %v361, %v395
    %397 = vmatmul.f32.gmra.mxu0 %v80
    %v398 = vpop.f32.mrf.mxu0
    %v399 = vadd.f32 %v364, %v398
    %400 = vmatmul.f32.gmra.mxu0 %v88
    %v401 = vpop.f32.mrf.mxu0
    %v402 = vadd.f32 %v367, %v401
    %403 = vmatmul.f32.gmra.mxu0 %v96
    %v404 = vpop.f32.mrf.mxu0
    %v405 = vadd.f32 %v370, %v404
    %406 = vdwg.mxu0
    %407 = vmatpush.xpose.msra.mxu0 0.0
    %408 = vmatpush.xpose.msra.mxu0 0.0
    %409 = vmatpush.xpose.msra.mxu0 0.0
    %410 = vmatpush.xpose.msra.mxu0 0.0
    %411 = vmatpush.xpose.msra.mxu0 0.0
    %412 = vmatpush.xpose.msra.mxu0 0.0
    %413 = vmatpush.xpose.msra.mxu0 0.0
    %414 = vmatpush.xpose.msra.mxu0 0.0
    %415 = vmatpush.xpose.msra.mxu0 %v161
    %416 = vmatpush.xpose.msra.mxu0 %v153
    %417 = vmatpush.xpose.msra.mxu0 %v145
    %418 = vmatpush.xpose.msra.mxu0 %v137
    %419 = vmatpush.xpose.msra.mxu0 %v129
    %420 = vmatpush.xpose.msra.mxu0 %v121
    %421 = vmatpush.xpose.msra.mxu0 %v113
    %422 = vmatpush.xpose.msra.mxu0 %v105
    %423 = vmatmul.f32.gmra.mxu0 %v57
    %v424 = vpop.f32.mrf.mxu0
    %v425 = vadd.f32 %v390, %v424
    %426 = vmatmul.f32.gmra.mxu0 %v65
    %v427 = vpop.f32.mrf.mxu0
    %v428 = vadd.f32 %v393, %v427
    %429 = vmatmul.f32.gmra.mxu0 %v73
    %v430 = vpop.f32.mrf.mxu0
    %v431 = vadd.f32 %v396, %v430
    %432 = vmatmul.f32.gmra.mxu0 %v81
    %v433 = vpop.f32.mrf.mxu0
    %v434 = vadd.f32 %v399, %v433
    %435 = vmatmul.f32.gmra.mxu0 %v89
    %v436 = vpop.f32.mrf.mxu0
    %v437 = vadd.f32 %v402, %v436
    %438 = vmatmul.f32.gmra.mxu0 %v97
    %v439 = vpop.f32.mrf.mxu0
    %v440 = vadd.f32 %v405, %v439
    %441 = vdwg.mxu0
    %v442 = vmul.f32 %v425, 0.0625
    %v443 = vmul.f32 %v428, 0.0625
    %v444 = vmul.f32 %v431, 0.0625
    %v445 = vmul.f32 %v434, 0.0625
    %v446 = vmul.f32 %v437, 0.0625
    %v447 = vmul.f32 %v440, 0.0625
    %v448 = vld [vmem:[%s2] sm:$0xf]
    %vm449 = vcmask 523264
    %v451 = vsel %vm449, %v442, 0
    %v454 = vsel %vm449, %v443, 0
    %v457 = vsel %vm449, %v444, 0
    %v460 = vsel %vm449, %v445, 0
    %v463 = vsel %vm449, %v446, 0
    %v466 = vsel %vm449, %v447, 0
    %v469 = vsel %vm449, %v448, 0
    %471 = vmatpush.xpose.msra.mxu0 0.0
    %472 = vmatpush.xpose.msra.mxu0 0.0
    %473 = vmatpush.xpose.msra.mxu0 0.0
    %474 = vmatpush.xpose.msra.mxu0 0.0
    %475 = vmatpush.xpose.msra.mxu0 0.0
    %476 = vmatpush.xpose.msra.mxu0 0.0
    %477 = vmatpush.xpose.msra.mxu0 0.0
    %478 = vmatpush.xpose.msra.mxu0 0.0
    %479 = vmatpush.xpose.msra.mxu0 0.0
    %480 = vmatpush.xpose.msra.mxu0 0.0
    %481 = vmatpush.xpose.msra.mxu0 0.0
    %482 = vmatpush.xpose.msra.mxu0 0.0
    %483 = vmatpush.xpose.msra.mxu0 0.0
    %484 = vmatpush.xpose.msra.mxu0 0.0
    %485 = vmatpush.xpose.msra.mxu0 0.0
    %486 = vmatpush.xpose.msra.mxu0 %v469
    %487 = vmatmul.f32.gmra.mxu0 %v451
    %v488 = vpop.f32.mrf.mxu0
    %v489 = vadd.f32 0.0, %v488
    %490 = vmatmul.f32.gmra.mxu0 %v454
    %v491 = vpop.f32.mrf.mxu0
    %v492 = vadd.f32 0.0, %v491
    %493 = vmatmul.f32.gmra.mxu0 %v457
    %v494 = vpop.f32.mrf.mxu0
    %v495 = vadd.f32 0.0, %v494
    %496 = vmatmul.f32.gmra.mxu0 %v460
    %v497 = vpop.f32.mrf.mxu0
    %v498 = vadd.f32 0.0, %v497
    %499 = vmatmul.f32.gmra.mxu0 %v463
    %v500 = vpop.f32.mrf.mxu0
    %v501 = vadd.f32 0.0, %v500
    %502 = vmatmul.f32.gmra.mxu0 %v466
    %v503 = vpop.f32.mrf.mxu0
    %v504 = vadd.f32 0.0, %v503
    %505 = vdwg.mxu0
    %v506 = vmax.f32 %v489, 0.0
    %v507 = vmax.f32 %v492, 0.0
    %v508 = vmax.f32 %v495, 0.0
    %v509 = vmax.f32 %v498, 0.0
    %v510 = vmax.f32 %v501, 0.0
    %v511 = vmax.f32 %v504, 0.0
    %v512 = vld [vmem:[%s3] sm:$0xff]
    %v513 = vld [vmem:[%s3 + $0x8] sm:$0xff]
    %v514 = vld [vmem:[%s3 + $0x10] sm:$0xff]
    %v515 = vld [vmem:[%s3 + $0x18] sm:$0xff]
    %v516 = vld [vmem:[%s3 + $0x20] sm:$0xff]
    %v517 = vld [vmem:[%s3 + $0x28] sm:$0xff]
    %v518 = vld [vmem:[%s3 + $0x30] sm:$0xff]
    %v519 = vld [vmem:[%s3 + $0x38] sm:$0xff]
    %vm520 = vcmask 31744
    %v522 = vsel %vm520, %v506, 0
    %v525 = vsel %vm520, %v507, 0
    %v528 = vsel %vm520, %v508, 0
    %v531 = vsel %vm520, %v509, 0
    %v534 = vsel %vm520, %v510, 0
    %v537 = vsel %vm520, %v511, 0
    %v540 = vsel %vm520, %v512, 0
    %v543 = vsel %vm520, %v513, 0
    %v546 = vsel %vm520, %v514, 0
    %v549 = vsel %vm520, %v515, 0
    %v552 = vsel %vm520, %v516, 0
    %v555 = vsel %vm520, %v517, 0
    %v558 = vsel %vm520, %v518, 0
    %v561 = vsel %vm520, %v519, 0
    %563 = vmatpush.xpose.msra.mxu0 0.0
    %564 = vmatpush.xpose.msra.mxu0 0.0
    %565 = vmatpush.xpose.msra.mxu0 0.0
    %566 = vmatpush.xpose.msra.mxu0 0.0
    %567 = vmatpush.xpose.msra.mxu0 0.0
    %568 = vmatpush.xpose.msra.mxu0 0.0
    %569 = vmatpush.xpose.msra.mxu0 0.0
    %570 = vmatpush.xpose.msra.mxu0 0.0
    %571 = vmatpush.xpose.msra.mxu0 %v561
    %572 = vmatpush.xpose.msra.mxu0 %v558
    %573 = vmatpush.xpose.msra.mxu0 %v555
    %574 = vmatpush.xpose.msra.mxu0 %v552
    %575 = vmatpush.xpose.msra.mxu0 %v549
    %576 = vmatpush.xpose.msra.mxu0 %v546
    %577 = vmatpush.xpose.msra.mxu0 %v543
    %578 = vmatpush.xpose.msra.mxu0 %v540
    %579 = vmatmul.f32.gmra.mxu0 %v522
    %v580 = vpop.f32.mrf.mxu0
    %v581 = vadd.f32 0.0, %v580
    %582 = vmatmul.f32.gmra.mxu0 %v525
    %v583 = vpop.f32.mrf.mxu0
    %v584 = vadd.f32 0.0, %v583
    %585 = vmatmul.f32.gmra.mxu0 %v528
    %v586 = vpop.f32.mrf.mxu0
    %v587 = vadd.f32 0.0, %v586
    %588 = vmatmul.f32.gmra.mxu0 %v531
    %v589 = vpop.f32.mrf.mxu0
    %v590 = vadd.f32 0.0, %v589
    %591 = vmatmul.f32.gmra.mxu0 %v534
    %v592 = vpop.f32.mrf.mxu0
    %v593 = vadd.f32 0.0, %v592
    %594 = vmatmul.f32.gmra.mxu0 %v537
    %v595 = vpop.f32.mrf.mxu0
    %v596 = vadd.f32 0.0, %v595
    %597 = vdwg.mxu0
    %v598 = vxor.u32 %v581, 2147483648
    %v599 = vxor.u32 %v584, 2147483648
    %v600 = vxor.u32 %v587, 2147483648
    %v601 = vxor.u32 %v590, 2147483648
    %v602 = vxor.u32 %v593, 2147483648
    %v603 = vxor.u32 %v596, 2147483648
    %v604 = vmul.f32 %v598, 1.442695
    %v605 = vpow.pop %v604
    %v606 = vmul.f32 %v599, 1.442695
    %v607 = vpow.pop %v606
    %v608 = vmul.f32 %v600, 1.442695
    %v609 = vpow.pop %v608
    %v610 = vmul.f32 %v601, 1.442695
    %v611 = vpow.pop %v610
    %v612 = vmul.f32 %v602, 1.442695
    %v613 = vpow.pop %v612
    %v614 = vmul.f32 %v603, 1.442695
    %v615 = vpow.pop %v614
    %v616 = vadd.f32 %v605, 1.0
    %v617 = vadd.f32 %v607, 1.0
    %v618 = vadd.f32 %v609, 1.0
    %v619 = vadd.f32 %v611, 1.0
    %v620 = vadd.f32 %v613, 1.0
    %v621 = vadd.f32 %v615, 1.0
    %v622 = vrcp.pop %v616
    %v623 = vmul.f32 %v616, %v622
    %v624 = vsub.f32 1.0, %v623
    %v625 = vmul.f32 %v622, %v624
    %v626 = vadd.f32 %v622, %v625
    %vm627 = vweird.f32 %v616
    %vm628 = vweird.f32 %v622
    %vm629 = vmor %vm627, %vm628
    %v630 = vsel %vm629, %v622, %v626
    %v631 = vand.u32 2147483647, %v616
    %vm632 = vcmp.eq.f32.partialorder %v631, 8.507059e+37
    %v633 = vand.u32 %v616, 2147483648
    %v634 = vor.u32 1.1754944e-38, %v633
    %v635 = vsel %vm632, %v634, %v630
    %v636 = vmul.f32 1.0, %v635
    %v637 = vrcp.pop %v617
    %v638 = vmul.f32 %v617, %v637
    %v639 = vsub.f32 1.0, %v638
    %v640 = vmul.f32 %v637, %v639
    %v641 = vadd.f32 %v637, %v640
    %vm642 = vweird.f32 %v617
    %vm643 = vweird.f32 %v637
    %vm644 = vmor %vm642, %vm643
    %v645 = vsel %vm644, %v637, %v641
    %v646 = vand.u32 2147483647, %v617
    %vm647 = vcmp.eq.f32.partialorder %v646, 8.507059e+37
    %v648 = vand.u32 %v617, 2147483648
    %v649 = vor.u32 1.1754944e-38, %v648
    %v650 = vsel %vm647, %v649, %v645
    %v651 = vmul.f32 1.0, %v650
    %v652 = vrcp.pop %v618
    %v653 = vmul.f32 %v618, %v652
    %v654 = vsub.f32 1.0, %v653
    %v655 = vmul.f32 %v652, %v654
    %v656 = vadd.f32 %v652, %v655
    %vm657 = vweird.f32 %v618
    %vm658 = vweird.f32 %v652
    %vm659 = vmor %vm657, %vm658
    %v660 = vsel %vm659, %v652, %v656
    %v661 = vand.u32 2147483647, %v618
    %vm662 = vcmp.eq.f32.partialorder %v661, 8.507059e+37
    %v663 = vand.u32 %v618, 2147483648
    %v664 = vor.u32 1.1754944e-38, %v663
    %v665 = vsel %vm662, %v664, %v660
    %v666 = vmul.f32 1.0, %v665
    %v667 = vrcp.pop %v619
    %v668 = vmul.f32 %v619, %v667
    %v669 = vsub.f32 1.0, %v668
    %v670 = vmul.f32 %v667, %v669
    %v671 = vadd.f32 %v667, %v670
    %vm672 = vweird.f32 %v619
    %vm673 = vweird.f32 %v667
    %vm674 = vmor %vm672, %vm673
    %v675 = vsel %vm674, %v667, %v671
    %v676 = vand.u32 2147483647, %v619
    %vm677 = vcmp.eq.f32.partialorder %v676, 8.507059e+37
    %v678 = vand.u32 %v619, 2147483648
    %v679 = vor.u32 1.1754944e-38, %v678
    %v680 = vsel %vm677, %v679, %v675
    %v681 = vmul.f32 1.0, %v680
    %v682 = vrcp.pop %v620
    %v683 = vmul.f32 %v620, %v682
    %v684 = vsub.f32 1.0, %v683
    %v685 = vmul.f32 %v682, %v684
    %v686 = vadd.f32 %v682, %v685
    %vm687 = vweird.f32 %v620
    %vm688 = vweird.f32 %v682
    %vm689 = vmor %vm687, %vm688
    %v690 = vsel %vm689, %v682, %v686
    %v691 = vand.u32 2147483647, %v620
    %vm692 = vcmp.eq.f32.partialorder %v691, 8.507059e+37
    %v693 = vand.u32 %v620, 2147483648
    %v694 = vor.u32 1.1754944e-38, %v693
    %v695 = vsel %vm692, %v694, %v690
    %v696 = vmul.f32 1.0, %v695
    %v697 = vrcp.pop %v621
    %v698 = vmul.f32 %v621, %v697
    %v699 = vsub.f32 1.0, %v698
    %v700 = vmul.f32 %v697, %v699
    %v701 = vadd.f32 %v697, %v700
    %vm702 = vweird.f32 %v621
    %vm703 = vweird.f32 %v697
    %vm704 = vmor %vm702, %vm703
    %v705 = vsel %vm704, %v697, %v701
    %v706 = vand.u32 2147483647, %v621
    %vm707 = vcmp.eq.f32.partialorder %v706, 8.507059e+37
    %v708 = vand.u32 %v621, 2147483648
    %v709 = vor.u32 1.1754944e-38, %v708
    %v710 = vsel %vm707, %v709, %v705
    %v711 = vmul.f32 1.0, %v710
    %v713 = vsel %vm449, %v636, 0
    %v716 = vsel %vm449, %v651, 0
    %v719 = vsel %vm449, %v666, 0
    %v722 = vsel %vm449, %v681, 0
    %v725 = vsel %vm449, %v696, 0
    %v728 = vsel %vm449, %v711, 0
    %730 = vmatpush.msra.mxu0 0.0
    %731 = vmatpush.msra.mxu0 0.0
    %732 = vmatpush.msra.mxu0 0.0
    %733 = vmatpush.msra.mxu0 0.0
    %734 = vmatpush.msra.mxu0 0.0
    %735 = vmatpush.msra.mxu0 0.0
    %736 = vmatpush.msra.mxu0 0.0
    %737 = vmatpush.msra.mxu0 0.0
    %738 = vmatpush.msra.mxu0 %v154
    %739 = vmatpush.msra.mxu0 %v146
    %740 = vmatpush.msra.mxu0 %v138
    %741 = vmatpush.msra.mxu0 %v130
    %742 = vmatpush.msra.mxu0 %v122
    %743 = vmatpush.msra.mxu0 %v114
    %744 = vmatpush.msra.mxu0 %v106
    %745 = vmatpush.msra.mxu0 %v98
    %746 = vmatmul.f32.gmra.mxu0 %v713
    %v747 = vpop.f32.mrf.mxu0
    %v748 = vadd.f32 0.0, %v747
    %749 = vmatmul.f32.gmra.mxu0 %v716
    %v750 = vpop.f32.mrf.mxu0
    %v751 = vadd.f32 0.0, %v750
    %752 = vmatmul.f32.gmra.mxu0 %v719
    %v753 = vpop.f32.mrf.mxu0
    %v754 = vadd.f32 0.0, %v753
    %755 = vmatmul.f32.gmra.mxu0 %v722
    %v756 = vpop.f32.mrf.mxu0
    %v757 = vadd.f32 0.0, %v756
    %758 = vmatmul.f32.gmra.mxu0 %v725
    %v759 = vpop.f32.mrf.mxu0
    %v760 = vadd.f32 0.0, %v759
    %761 = vmatmul.f32.gmra.mxu0 %v728
    %v762 = vpop.f32.mrf.mxu0
    %v763 = vadd.f32 0.0, %v762
    %764 = vdwg.mxu0
    %765 = vmatpush.msra.mxu0 0.0
    %766 = vmatpush.msra.mxu0 0.0
    %767 = vmatpush.msra.mxu0 0.0
    %768 = vmatpush.msra.mxu0 0.0
    %769 = vmatpush.msra.mxu0 0.0
    %770 = vmatpush.msra.mxu0 0.0
    %771 = vmatpush.msra.mxu0 0.0
    %772 = vmatpush.msra.mxu0 0.0
    %773 = vmatpush.msra.mxu0 %v155
    %774 = vmatpush.msra.mxu0 %v147
    %775 = vmatpush.msra.mxu0 %v139
    %776 = vmatpush.msra.mxu0 %v131
    %777 = vmatpush.msra.mxu0 %v123
    %778 = vmatpush.msra.mxu0 %v115
    %779 = vmatpush.msra.mxu0 %v107
    %780 = vmatpush.msra.mxu0 %v99
    %781 = vmatmul.f32.gmra.mxu0 %v713
    %v782 = vpop.f32.mrf.mxu0
    %v783 = vadd.f32 0.0, %v782
    %784 = vmatmul.f32.gmra.mxu0 %v716
    %v785 = vpop.f32.mrf.mxu0
    %v786 = vadd.f32 0.0, %v785
    %787 = vmatmul.f32.gmra.mxu0 %v719
    %v788 = vpop.f32.mrf.mxu0
    %v789 = vadd.f32 0.0, %v788
    %790 = vmatmul.f32.gmra.mxu0 %v722
    %v791 = vpop.f32.mrf.mxu0
    %v792 = vadd.f32 0.0, %v791
    %793 = vmatmul.f32.gmra.mxu0 %v725
    %v794 = vpop.f32.mrf.mxu0
    %v795 = vadd.f32 0.0, %v794
    %796 = vmatmul.f32.gmra.mxu0 %v728
    %v797 = vpop.f32.mrf.mxu0
    %v798 = vadd.f32 0.0, %v797
    %799 = vdwg.mxu0
    %800 = vmatpush.msra.mxu0 0.0
    %801 = vmatpush.msra.mxu0 0.0
    %802 = vmatpush.msra.mxu0 0.0
    %803 = vmatpush.msra.mxu0 0.0
    %804 = vmatpush.msra.mxu0 0.0
    %805 = vmatpush.msra.mxu0 0.0
    %806 = vmatpush.msra.mxu0 0.0
    %807 = vmatpush.msra.mxu0 0.0
    %808 = vmatpush.msra.mxu0 %v156
    %809 = vmatpush.msra.mxu0 %v148
    %810 = vmatpush.msra.mxu0 %v140
    %811 = vmatpush.msra.mxu0 %v132
    %812 = vmatpush.msra.mxu0 %v124
    %813 = vmatpush.msra.mxu0 %v116
    %814 = vmatpush.msra.mxu0 %v108
    %815 = vmatpush.msra.mxu0 %v100
    %816 = vmatmul.f32.gmra.mxu0 %v713
    %v817 = vpop.f32.mrf.mxu0
    %v818 = vadd.f32 0.0, %v817
    %819 = vmatmul.f32.gmra.mxu0 %v716
    %v820 = vpop.f32.mrf.mxu0
    %v821 = vadd.f32 0.0, %v820
    %822 = vmatmul.f32.gmra.mxu0 %v719
    %v823 = vpop.f32.mrf.mxu0
    %v824 = vadd.f32 0.0, %v823
    %825 = vmatmul.f32.gmra.mxu0 %v722
    %v826 = vpop.f32.mrf.mxu0
    %v827 = vadd.f32 0.0, %v826
    %828 = vmatmul.f32.gmra.mxu0 %v725
    %v829 = vpop.f32.mrf.mxu0
    %v830 = vadd.f32 0.0, %v829
    %831 = vmatmul.f32.gmra.mxu0 %v728
    %v832 = vpop.f32.mrf.mxu0
    %v833 = vadd.f32 0.0, %v832
    %834 = vdwg.mxu0
    %835 = vmatpush.msra.mxu0 0.0
    %836 = vmatpush.msra.mxu0 0.0
    %837 = vmatpush.msra.mxu0 0.0
    %838 = vmatpush.msra.mxu0 0.0
    %839 = vmatpush.msra.mxu0 0.0
    %840 = vmatpush.msra.mxu0 0.0
    %841 = vmatpush.msra.mxu0 0.0
    %842 = vmatpush.msra.mxu0 0.0
    %843 = vmatpush.msra.mxu0 %v157
    %844 = vmatpush.msra.mxu0 %v149
    %845 = vmatpush.msra.mxu0 %v141
    %846 = vmatpush.msra.mxu0 %v133
    %847 = vmatpush.msra.mxu0 %v125
    %848 = vmatpush.msra.mxu0 %v117
    %849 = vmatpush.msra.mxu0 %v109
    %850 = vmatpush.msra.mxu0 %v101
    %851 = vmatmul.f32.gmra.mxu0 %v713
    %v852 = vpop.f32.mrf.mxu0
    %v853 = vadd.f32 0.0, %v852
    %854 = vmatmul.f32.gmra.mxu0 %v716
    %v855 = vpop.f32.mrf.mxu0
    %v856 = vadd.f32 0.0, %v855
    %857 = vmatmul.f32.gmra.mxu0 %v719
    %v858 = vpop.f32.mrf.mxu0
    %v859 = vadd.f32 0.0, %v858
    %860 = vmatmul.f32.gmra.mxu0 %v722
    %v861 = vpop.f32.mrf.mxu0
    %v862 = vadd.f32 0.0, %v861
    %863 = vmatmul.f32.gmra.mxu0 %v725
    %v864 = vpop.f32.mrf.mxu0
    %v865 = vadd.f32 0.0, %v864
    %866 = vmatmul.f32.gmra.mxu0 %v728
    %v867 = vpop.f32.mrf.mxu0
    %v868 = vadd.f32 0.0, %v867
    %869 = vdwg.mxu0
    %870 = vmatpush.msra.mxu0 0.0
    %871 = vmatpush.msra.mxu0 0.0
    %872 = vmatpush.msra.mxu0 0.0
    %873 = vmatpush.msra.mxu0 0.0
    %874 = vmatpush.msra.mxu0 0.0
    %875 = vmatpush.msra.mxu0 0.0
    %876 = vmatpush.msra.mxu0 0.0
    %877 = vmatpush.msra.mxu0 0.0
    %878 = vmatpush.msra.mxu0 %v158
    %879 = vmatpush.msra.mxu0 %v150
    %880 = vmatpush.msra.mxu0 %v142
    %881 = vmatpush.msra.mxu0 %v134
    %882 = vmatpush.msra.mxu0 %v126
    %883 = vmatpush.msra.mxu0 %v118
    %884 = vmatpush.msra.mxu0 %v110
    %885 = vmatpush.msra.mxu0 %v102
    %886 = vmatmul.f32.gmra.mxu0 %v713
    %v887 = vpop.f32.mrf.mxu0
    %v888 = vadd.f32 0.0, %v887
    %889 = vmatmul.f32.gmra.mxu0 %v716
    %v890 = vpop.f32.mrf.mxu0
    %v891 = vadd.f32 0.0, %v890
    %892 = vmatmul.f32.gmra.mxu0 %v719
    %v893 = vpop.f32.mrf.mxu0
    %v894 = vadd.f32 0.0, %v893
    %895 = vmatmul.f32.gmra.mxu0 %v722
    %v896 = vpop.f32.mrf.mxu0
    %v897 = vadd.f32 0.0, %v896
    %898 = vmatmul.f32.gmra.mxu0 %v725
    %v899 = vpop.f32.mrf.mxu0
    %v900 = vadd.f32 0.0, %v899
    %901 = vmatmul.f32.gmra.mxu0 %v728
    %v902 = vpop.f32.mrf.mxu0
    %v903 = vadd.f32 0.0, %v902
    %904 = vdwg.mxu0
    %905 = vmatpush.msra.mxu0 0.0
    %906 = vmatpush.msra.mxu0 0.0
    %907 = vmatpush.msra.mxu0 0.0
    %908 = vmatpush.msra.mxu0 0.0
    %909 = vmatpush.msra.mxu0 0.0
    %910 = vmatpush.msra.mxu0 0.0
    %911 = vmatpush.msra.mxu0 0.0
    %912 = vmatpush.msra.mxu0 0.0
    %913 = vmatpush.msra.mxu0 %v159
    %914 = vmatpush.msra.mxu0 %v151
    %915 = vmatpush.msra.mxu0 %v143
    %916 = vmatpush.msra.mxu0 %v135
    %917 = vmatpush.msra.mxu0 %v127
    %918 = vmatpush.msra.mxu0 %v119
    %919 = vmatpush.msra.mxu0 %v111
    %920 = vmatpush.msra.mxu0 %v103
    %921 = vmatmul.f32.gmra.mxu0 %v713
    %v922 = vpop.f32.mrf.mxu0
    %v923 = vadd.f32 0.0, %v922
    %924 = vmatmul.f32.gmra.mxu0 %v716
    %v925 = vpop.f32.mrf.mxu0
    %v926 = vadd.f32 0.0, %v925
    %927 = vmatmul.f32.gmra.mxu0 %v719
    %v928 = vpop.f32.mrf.mxu0
    %v929 = vadd.f32 0.0, %v928
    %930 = vmatmul.f32.gmra.mxu0 %v722
    %v931 = vpop.f32.mrf.mxu0
    %v932 = vadd.f32 0.0, %v931
    %933 = vmatmul.f32.gmra.mxu0 %v725
    %v934 = vpop.f32.mrf.mxu0
    %v935 = vadd.f32 0.0, %v934
    %936 = vmatmul.f32.gmra.mxu0 %v728
    %v937 = vpop.f32.mrf.mxu0
    %v938 = vadd.f32 0.0, %v937
    %939 = vdwg.mxu0
    %940 = vmatpush.msra.mxu0 0.0
    %941 = vmatpush.msra.mxu0 0.0
    %942 = vmatpush.msra.mxu0 0.0
    %943 = vmatpush.msra.mxu0 0.0
    %944 = vmatpush.msra.mxu0 0.0
    %945 = vmatpush.msra.mxu0 0.0
    %946 = vmatpush.msra.mxu0 0.0
    %947 = vmatpush.msra.mxu0 0.0
    %948 = vmatpush.msra.mxu0 %v160
    %949 = vmatpush.msra.mxu0 %v152
    %950 = vmatpush.msra.mxu0 %v144
    %951 = vmatpush.msra.mxu0 %v136
    %952 = vmatpush.msra.mxu0 %v128
    %953 = vmatpush.msra.mxu0 %v120
    %954 = vmatpush.msra.mxu0 %v112
    %955 = vmatpush.msra.mxu0 %v104
    %956 = vmatmul.f32.gmra.mxu0 %v713
    %v957 = vpop.f32.mrf.mxu0
    %v958 = vadd.f32 0.0, %v957
    %959 = vmatmul.f32.gmra.mxu0 %v716
    %v960 = vpop.f32.mrf.mxu0
    %v961 = vadd.f32 0.0, %v960
    %962 = vmatmul.f32.gmra.mxu0 %v719
    %v963 = vpop.f32.mrf.mxu0
    %v964 = vadd.f32 0.0, %v963
    %965 = vmatmul.f32.gmra.mxu0 %v722
    %v966 = vpop.f32.mrf.mxu0
    %v967 = vadd.f32 0.0, %v966
    %968 = vmatmul.f32.gmra.mxu0 %v725
    %v969 = vpop.f32.mrf.mxu0
    %v970 = vadd.f32 0.0, %v969
    %971 = vmatmul.f32.gmra.mxu0 %v728
    %v972 = vpop.f32.mrf.mxu0
    %v973 = vadd.f32 0.0, %v972
    %974 = vdwg.mxu0
    %975 = vmatpush.msra.mxu0 0.0
    %976 = vmatpush.msra.mxu0 0.0
    %977 = vmatpush.msra.mxu0 0.0
    %978 = vmatpush.msra.mxu0 0.0
    %979 = vmatpush.msra.mxu0 0.0
    %980 = vmatpush.msra.mxu0 0.0
    %981 = vmatpush.msra.mxu0 0.0
    %982 = vmatpush.msra.mxu0 0.0
    %983 = vmatpush.msra.mxu0 %v161
    %984 = vmatpush.msra.mxu0 %v153
    %985 = vmatpush.msra.mxu0 %v145
    %986 = vmatpush.msra.mxu0 %v137
    %987 = vmatpush.msra.mxu0 %v129
    %988 = vmatpush.msra.mxu0 %v121
    %989 = vmatpush.msra.mxu0 %v113
    %990 = vmatpush.msra.mxu0 %v105
    %991 = vmatmul.f32.gmra.mxu0 %v713
    %v992 = vpop.f32.mrf.mxu0
    %v993 = vadd.f32 0.0, %v992
    %994 = vmatmul.f32.gmra.mxu0 %v716
    %v995 = vpop.f32.mrf.mxu0
    %v996 = vadd.f32 0.0, %v995
    %997 = vmatmul.f32.gmra.mxu0 %v719
    %v998 = vpop.f32.mrf.mxu0
    %v999 = vadd.f32 0.0, %v998
    %1000 = vmatmul.f32.gmra.mxu0 %v722
    %v1001 = vpop.f32.mrf.mxu0
    %v1002 = vadd.f32 0.0, %v1001
    %1003 = vmatmul.f32.gmra.mxu0 %v725
    %v1004 = vpop.f32.mrf.mxu0
    %v1005 = vadd.f32 0.0, %v1004
    %1006 = vmatmul.f32.gmra.mxu0 %v728
    %v1007 = vpop.f32.mrf.mxu0
    %v1008 = vadd.f32 0.0, %v1007
    %1009 = vdwg.mxu0
    %v1010 = vmul.f32 %v50, %v748
    %v1011 = vmul.f32 %v51, %v783
    %v1012 = vmul.f32 %v52, %v818
    %v1013 = vmul.f32 %v53, %v853
    %v1014 = vmul.f32 %v54, %v888
    %v1015 = vmul.f32 %v55, %v923
    %v1016 = vmul.f32 %v56, %v958
    %v1017 = vmul.f32 %v57, %v993
    %v1018 = vmul.f32 %v58, %v751
    %v1019 = vmul.f32 %v59, %v786
    %v1020 = vmul.f32 %v60, %v821
    %v1021 = vmul.f32 %v61, %v856
    %v1022 = vmul.f32 %v62, %v891
    %v1023 = vmul.f32 %v63, %v926
    %v1024 = vmul.f32 %v64, %v961
    %v1025 = vmul.f32 %v65, %v996
    %v1026 = vmul.f32 %v66, %v754
    %v1027 = vmul.f32 %v67, %v789
    %v1028 = vmul.f32 %v68, %v824
    %v1029 = vmul.f32 %v69, %v859
    %v1030 = vmul.f32 %v70, %v894
    %v1031 = vmul.f32 %v71, %v929
    %v1032 = vmul.f32 %v72, %v964
    %v1033 = vmul.f32 %v73, %v999
    %v1034 = vmul.f32 %v74, %v757
    %v1035 = vmul.f32 %v75, %v792
    %v1036 = vmul.f32 %v76, %v827
    %v1037 = vmul.f32 %v77, %v862
    %v1038 = vmul.f32 %v78, %v897
    %v1039 = vmul.f32 %v79, %v932
    %v1040 = vmul.f32 %v80, %v967
    %v1041 = vmul.f32 %v81, %v1002
    %v1042 = vmul.f32 %v82, %v760
    %v1043 = vmul.f32 %v83, %v795
    %v1044 = vmul.f32 %v84, %v830
    %v1045 = vmul.f32 %v85, %v865
    %v1046 = vmul.f32 %v86, %v900
    %v1047 = vmul.f32 %v87, %v935
    %v1048 = vmul.f32 %v88, %v970
    %v1049 = vmul.f32 %v89, %v1005
    %v1050 = vmul.f32 %v90, %v763
    %v1051 = vmul.f32 %v91, %v798
    %v1052 = vmul.f32 %v92, %v833
    %v1053 = vmul.f32 %v93, %v868
    %v1054 = vmul.f32 %v94, %v903
    %v1055 = vmul.f32 %v95, %v938
    %v1056 = vmul.f32 %v96, %v973
    %v1057 = vmul.f32 %v97, %v1008
    %1058 = vst [vmem:[#allocation7] sm:$0xff] %v1010
    %1059 = vst [vmem:[#allocation7 + $0x8] sm:$0xff] %v1011
    %1060 = vst [vmem:[#allocation7 + $0x10] sm:$0xff] %v1012
    %1061 = vst [vmem:[#allocation7 + $0x18] sm:$0xff] %v1013
    %1062 = vst [vmem:[#allocation7 + $0x20] sm:$0xff] %v1014
    %1063 = vst [vmem:[#allocation7 + $0x28] sm:$0xff] %v1015
    %1064 = vst [vmem:[#allocation7 + $0x30] sm:$0xff] %v1016
    %1065 = vst [vmem:[#allocation7 + $0x38] sm:$0xff] %v1017
    %1066 = vst [vmem:[#allocation7 + $0x40] sm:$0xff] %v1018
    %1067 = vst [vmem:[#allocation7 + $0x48] sm:$0xff] %v1019
    %1068 = vst [vmem:[#allocation7 + $0x50] sm:$0xff] %v1020
    %1069 = vst [vmem:[#allocation7 + $0x58] sm:$0xff] %v1021
    %1070 = vst [vmem:[#allocation7 + $0x60] sm:$0xff] %v1022
    %1071 = vst [vmem:[#allocation7 + $0x68] sm:$0xff] %v1023
    %1072 = vst [vmem:[#allocation7 + $0x70] sm:$0xff] %v1024
    %1073 = vst [vmem:[#allocation7 + $0x78] sm:$0xff] %v1025
    %1074 = vst [vmem:[#allocation7 + $0x80] sm:$0xff] %v1026
    %1075 = vst [vmem:[#allocation7 + $0x88] sm:$0xff] %v1027
    %1076 = vst [vmem:[#allocation7 + $0x90] sm:$0xff] %v1028
    %1077 = vst [vmem:[#allocation7 + $0x98] sm:$0xff] %v1029
    %1078 = vst [vmem:[#allocation7 + $0xa0] sm:$0xff] %v1030
    %1079 = vst [vmem:[#allocation7 + $0xa8] sm:$0xff] %v1031
    %1080 = vst [vmem:[#allocation7 + $0xb0] sm:$0xff] %v1032
    %1081 = vst [vmem:[#allocation7 + $0xb8] sm:$0xff] %v1033
    %1082 = vst [vmem:[#allocation7 + $0xc0] sm:$0xff] %v1034
    %1083 = vst [vmem:[#allocation7 + $0xc8] sm:$0xff] %v1035
    %1084 = vst [vmem:[#allocation7 + $0xd0] sm:$0xff] %v1036
    %1085 = vst [vmem:[#allocation7 + $0xd8] sm:$0xff] %v1037
    %1086 = vst [vmem:[#allocation7 + $0xe0] sm:$0xff] %v1038
    %1087 = vst [vmem:[#allocation7 + $0xe8] sm:$0xff] %v1039
    %1088 = vst [vmem:[#allocation7 + $0xf0] sm:$0xff] %v1040
    %1089 = vst [vmem:[#allocation7 + $0xf8] sm:$0xff] %v1041
    %1090 = vst [vmem:[#allocation7 + $0x100] sm:$0xff] %v1042
    %1091 = vst [vmem:[#allocation7 + $0x108] sm:$0xff] %v1043
    %1092 = vst [vmem:[#allocation7 + $0x110] sm:$0xff] %v1044
    %1093 = vst [vmem:[#allocation7 + $0x118] sm:$0xff] %v1045
    %1094 = vst [vmem:[#allocation7 + $0x120] sm:$0xff] %v1046
    %1095 = vst [vmem:[#allocation7 + $0x128] sm:$0xff] %v1047
    %1096 = vst [vmem:[#allocation7 + $0x130] sm:$0xff] %v1048
    %1097 = vst [vmem:[#allocation7 + $0x138] sm:$0xff] %v1049
    %1098 = vst [vmem:[#allocation7 + $0x140] sm:$0xff] %v1050
    %1099 = vst [vmem:[#allocation7 + $0x148] sm:$0xff] %v1051
    %1100 = vst [vmem:[#allocation7 + $0x150] sm:$0xff] %v1052
    %1101 = vst [vmem:[#allocation7 + $0x158] sm:$0xff] %v1053
    %1102 = vst [vmem:[#allocation7 + $0x160] sm:$0xff] %v1054
    %1103 = vst [vmem:[#allocation7 + $0x168] sm:$0xff] %v1055
    %1104 = vst [vmem:[#allocation7 + $0x170] sm:$0xff] %v1056
    %1105 = vst [vmem:[#allocation7 + $0x178] sm:$0xff] %v1057
    // Predicated region
    $region26: #{tpu_custom_call.1} parent=1 // pred_check
      _
    $region27: #{tpu_custom_call.1} parent=1 // pred_check_branch
      %1107 = sbr.rel (0) target = $region29
    $region28: #{tpu_custom_call.1} parent=1 // pred_region
      %1109 = vsyncadd [#allocation4], 0
      %s1110 = sshll.u32 [#allocation7], 4
      %s1111 = int_to_ptr.vmem [resolvable:$true] %s1110
      %s1112 = sshll.u32 %s4, 4
      %s1113 = int_to_ptr.hbm [resolvable:$true] %s1112
      %1118 = dma.vmem_to_hbm [thread:$0]  %s1111, 6144, %s1113, [#allocation4], 1024, 1024, 64
    $region29: #{tpu_custom_call.1} parent=1 // pred_fallthru
      _
    // Predicated region
    $region30: #{tpu_custom_call.1} parent=1 // pred_check
      _
    $region31: #{tpu_custom_call.1} parent=1 // pred_check_branch
      %1120 = sbr.rel (0) target = $region33
    $region32: #{tpu_custom_call.1} parent=1 // pred_region
      %1122 = dma.done [#allocation4], 6144
    $region33: #{tpu_custom_call.1} parent=1 // pred_fallthru
      _
    %1123 = vsyncpa [#allocation3], 1
    %1124 = vsyncpa [#allocation6], 1
    %1125 = vsyncpa [#allocation4], 1

</llo_original>
